<compile_context>
chip_gen: v6e
topology: v6e:2x2x1
jax: 0.10.0
libtpu: 0.0.40
codegen_flags: <defaults>
</compile_context>

<pallas_src>
import functools

import jax
import jax.numpy as jnp
from jax.experimental import pallas as pl
from jax.experimental.pallas import tpu as pltpu

LANE = 128
_VMEM_LIMIT = 32 * 1024 * 1024  # conservative; fits v5e/v6e/v7x scoped VMEM


def _round_up(x, m):
    return (x + m - 1) // m * m


# ---------------------------------------------------------------------------
# fused forward kernel: everything resident in VMEM, single invocation
# ---------------------------------------------------------------------------
def _make_fused_kernel(valid_cols):
    def kernel(a_ref, x_ref, w1_ref, b1_ref, w2_ref, b2_ref, o_ref):
        a = a_ref[...]  # (n_pad, n_pad) bf16, read from HBM once, used twice

        # ---- layer 1: relu(Ahat @ (X @ W1) + b1) ----------------------------
        xw1 = jnp.dot(x_ref[...], w1_ref[...],
                      preferred_element_type=jnp.float32)
        h = jnp.dot(a, xw1.astype(jnp.bfloat16),
                    preferred_element_type=jnp.float32)
        h = jnp.maximum(h + b1_ref[...], 0.0).astype(jnp.bfloat16)

        # F.dropout(training=False) == identity.
        # TODO(synk): training-mode dropout would use pltpu.prng_seed +
        # pltpu.stateful_bernoulli(p=0.5) with 1/(1-p) rescale here.

        # ---- layer 2: log_softmax(Ahat @ (H @ W2) + b2) ----------------------
        hw2 = jnp.dot(h, w2_ref[...], preferred_element_type=jnp.float32)
        z = jnp.dot(a, hw2.astype(jnp.bfloat16),
                    preferred_element_type=jnp.float32) + b2_ref[...]

        # masked log_softmax over the first `valid_cols` lanes (f32 epilogue)
        lane = jax.lax.broadcasted_iota(jnp.int32, z.shape, 1)
        zm = jnp.where(lane < valid_cols, z, -jnp.inf)
        m = jnp.max(zm, axis=1, keepdims=True)
        s = zm - m
        lse = jnp.log(jnp.sum(jnp.exp(s), axis=1, keepdims=True))
        o_ref[...] = (s - lse).astype(o_ref.dtype)

    return kernel


def _fused_forward(a_p, x_p, w1_p, b1_p, w2_p, b2_p, *, ncls):
    n_pad = a_p.shape[0]
    c_pad = w2_p.shape[1]
    vmem = pl.BlockSpec(memory_space=pltpu.MemorySpace.VMEM)
    return pl.pallas_call(
        _make_fused_kernel(ncls),
        out_shape=jax.ShapeDtypeStruct((n_pad, c_pad), jnp.float32),
        in_specs=[vmem] * 6,
        out_specs=vmem,
        compiler_params=pltpu.CompilerParams(vmem_limit_bytes=_VMEM_LIMIT),
    )(a_p, x_p, w1_p, b1_p, w2_p, b2_p)


# ---------------------------------------------------------------------------
# one-time input preparation (padding + bf16 casts), hoisted out of forward
# ---------------------------------------------------------------------------
def prepare_gcn_inputs(ahat, x, w1, b1, w2, b2):
    n, f_in = x.shape
    hid = w1.shape[1]
    ncls = w2.shape[1]

    n_pad = _round_up(n, LANE)
    h_pad = _round_up(hid, LANE)
    c_pad = _round_up(ncls, LANE)

    # Ahat kept as bf16 for the native MXU path; accumulation is f32.
    # (Switch to f32 here if tighter accuracy is ever required.)
    a_p = jnp.zeros((n_pad, n_pad), jnp.bfloat16).at[:n, :n].set(
        ahat.astype(jnp.bfloat16))
    x_p = jnp.zeros((n_pad, f_in), jnp.bfloat16).at[:n, :].set(
        x.astype(jnp.bfloat16))
    w1_p = jnp.zeros((f_in, h_pad), jnp.bfloat16).at[:, :hid].set(
        w1.astype(jnp.bfloat16))
    b1_p = jnp.zeros((1, h_pad), jnp.float32).at[0, :hid].set(
        b1.reshape(-1).astype(jnp.float32))
    w2_p = jnp.zeros((h_pad, c_pad), jnp.bfloat16).at[:hid, :ncls].set(
        w2.astype(jnp.bfloat16))
    b2_p = jnp.zeros((1, c_pad), jnp.float32).at[0, :ncls].set(
        b2.reshape(-1).astype(jnp.float32))
    return a_p, x_p, w1_p, b1_p, w2_p, b2_p


@functools.partial(jax.jit, static_argnames=("n", "ncls"))
def gcn_forward_padded(a_p, x_p, w1_p, b1_p, w2_p, b2_p, *, n, ncls):
    """Steady-state forward on pre-padded inputs (what you'd call in a loop)."""
    out = _fused_forward(a_p, x_p, w1_p, b1_p, w2_p, b2_p, ncls=ncls)
    # Padded rows (n..n_pad) and lanes (ncls..c_pad) carry garbage/-inf by
    # design; they are sliced off here and must never be reduced over before
    # this slice.
    return out[:n, :ncls]


def gcn_forward(ahat, x, w1, b1, w2, b2):
    """Convenience wrapper: pad once + fused forward."""
    n = x.shape[0]
    ncls = w2.shape[1]
    padded = prepare_gcn_inputs(ahat, x, w1, b1, w2, b2)
    return gcn_forward_padded(*padded, n=n, ncls=ncls)


# ---------------------------------------------------------------------------
# helpers: graph construction, init, pure-JAX f32 reference
# ---------------------------------------------------------------------------
def build_normalized_adjacency(edge_index, num_nodes):
    """Dense Ahat = D^{-1/2} (A + I) D^{-1/2}  (GCNConv normalization)."""
    src, dst = edge_index[0], edge_index[1]
    a = jnp.zeros((num_nodes, num_nodes), jnp.float32)
    a = a.at[dst, src].set(1.0)                      # message j -> i
    a = a + jnp.eye(num_nodes, dtype=jnp.float32)    # self loops
    deg = jnp.sum(a, axis=1)
    d_inv_sqrt = jnp.where(deg > 0, 1.0 / jnp.sqrt(deg), 0.0)
    return d_inv_sqrt[:, None] * a * d_inv_sqrt[None, :]


def glorot(key, shape):
    fan_in, fan_out = shape
    limit = jnp.sqrt(6.0 / (fan_in + fan_out))
    return jax.random.uniform(key, shape, jnp.float32, -limit, limit)


def gcn_reference(ahat, x, w1, b1, w2, b2):
    h = jnp.maximum(ahat @ (x @ w1) + b1[None, :], 0.0)
    z = ahat @ (h @ w2) + b2[None, :]
    return jax.nn.log_softmax(z, axis=1)


if __name__ == "__main__":
    # Shapes consistent with the module: pNFeatures=8, pNNeurons=32,
    # numberOfClasses=4.  N=300 nodes (pads to 384 = 3x128 lanes/rows).
    N, F_IN, HID, NCLS = 300, 8, 32, 4

    key = jax.random.PRNGKey(0)
    k_x, k_w1, k_w2 = jax.random.split(key, 3)

    x = jax.random.normal(k_x, (N, F_IN), jnp.float32)

    # Deterministic graph: bidirectional ring + two chords.
    ring_src = jnp.arange(N, dtype=jnp.int32)
    ring_dst = (ring_src + 1) % N
    chord_src = jnp.array([0, N // 2, 7, N - 5], jnp.int32)
    chord_dst = jnp.array([N // 2, 0, N - 5, 7], jnp.int32)
    src = jnp.concatenate([ring_src, ring_dst, chord_src])
    dst = jnp.concatenate([ring_dst, ring_src, chord_dst])
    edge_index = jnp.stack([src, dst], axis=0)  # (2, E)

    ahat = build_normalized_adjacency(edge_index, N)

    # GCNConv weights (in, out); biases initialized to zero as in PyG.
    w1 = glorot(k_w1, (F_IN, HID))
    b1 = jnp.zeros((HID,), jnp.float32)
    w2 = glorot(k_w2, (HID, NCLS))
    b2 = jnp.zeros((NCLS,), jnp.float32)

    # One-time preparation (padding/casting), then the fused kernel.
    padded = prepare_gcn_inputs(ahat, x, w1, b1, w2, b2)
    out = jax.block_until_ready(
        gcn_forward_padded(*padded, n=N, ncls=NCLS))

    assert out.shape == (N, NCLS)

    # Rows must be valid log-probabilities.
    row_sums = jnp.sum(jnp.exp(out), axis=1)
    assert bool(jnp.all(jnp.abs(row_sums - 1.0) < 1e-4))

    # Match the f32 reference (bf16 MXU inputs -> tolerance, not exactness).
    ref = gcn_reference(ahat, x, w1, b1, w2, b2)
    assert bool(jnp.all(jnp.abs(out - ref) < 5e-2))

    print("KERNEL_OK")
</pallas_src>

<mosaic_0001>
module attributes {stable_mosaic.version = 11 : i64} {
  func.func @kernel(%arg0: memref<384x384xbf16, #tpu.memory_space<vmem>>, %arg1: memref<384x8xbf16, #tpu.memory_space<vmem>>, %arg2: memref<8x128xbf16, #tpu.memory_space<vmem>>, %arg3: memref<1x128xf32, #tpu.memory_space<vmem>>, %arg4: memref<128x128xbf16, #tpu.memory_space<vmem>>, %arg5: memref<1x128xf32, #tpu.memory_space<vmem>>, %arg6: memref<384x128xf32, #tpu.memory_space<vmem>>) attributes {dimension_semantics = [], scalar_prefetch = 0 : i64, scratch_operands = 0 : i64, tpu.core_type = #tpu.core_type<tc>} {
    %c0 = arith.constant 0 : index
    %c0_0 = arith.constant 0 : index
    %0 = vector.load %arg0[%c0, %c0_0] : memref<384x384xbf16, #tpu.memory_space<vmem>>, vector<384x384xbf16>
    %c0_1 = arith.constant 0 : index
    %c0_2 = arith.constant 0 : index
    %1 = vector.load %arg1[%c0_1, %c0_2] : memref<384x8xbf16, #tpu.memory_space<vmem>>, vector<384x8xbf16>
    %c0_3 = arith.constant 0 : index
    %c0_4 = arith.constant 0 : index
    %2 = vector.load %arg2[%c0_3, %c0_4] : memref<8x128xbf16, #tpu.memory_space<vmem>>, vector<8x128xbf16>
    %cst = arith.constant dense<0.000000e+00> : vector<384x128xf32>
    %3 = tpu.matmul %1, %2, %cst {dimension_numbers = #tpu.dot_dimension_numbers<[1], [0], [0], [1], [0, 0, 1, 1], [], []>} : vector<384x8xbf16>, vector<8x128xbf16>, vector<384x128xf32> -> vector<384x128xf32>
    %4 = arith.truncf %3 : vector<384x128xf32> to vector<384x128xbf16>
    %cst_5 = arith.constant dense<0.000000e+00> : vector<384x128xf32>
    %5 = tpu.matmul %0, %4, %cst_5 {dimension_numbers = #tpu.dot_dimension_numbers<[1], [0], [0], [1], [0, 0, 1, 1], [], []>} : vector<384x384xbf16>, vector<384x128xbf16>, vector<384x128xf32> -> vector<384x128xf32>
    %c0_6 = arith.constant 0 : index
    %c0_7 = arith.constant 0 : index
    %6 = vector.load %arg3[%c0_6, %c0_7] : memref<1x128xf32, #tpu.memory_space<vmem>>, vector<1x128xf32>
    %7 = vector.broadcast %6 : vector<1x128xf32> to vector<384x128xf32>
    %8 = arith.addf %5, %7 : vector<384x128xf32>
    %cst_8 = arith.constant 0.000000e+00 : f32
    %9 = vector.broadcast %cst_8 : f32 to vector<384x128xf32>
    %10 = arith.maximumf %8, %9 : vector<384x128xf32>
    %11 = arith.truncf %10 : vector<384x128xf32> to vector<384x128xbf16>
    %c0_9 = arith.constant 0 : index
    %c0_10 = arith.constant 0 : index
    %12 = vector.load %arg4[%c0_9, %c0_10] : memref<128x128xbf16, #tpu.memory_space<vmem>>, vector<128x128xbf16>
    %cst_11 = arith.constant dense<0.000000e+00> : vector<384x128xf32>
    %13 = tpu.matmul %11, %12, %cst_11 {dimension_numbers = #tpu.dot_dimension_numbers<[1], [0], [0], [1], [0, 0, 1, 1], [], []>} : vector<384x128xbf16>, vector<128x128xbf16>, vector<384x128xf32> -> vector<384x128xf32>
    %14 = arith.truncf %13 : vector<384x128xf32> to vector<384x128xbf16>
    %cst_12 = arith.constant dense<0.000000e+00> : vector<384x128xf32>
    %15 = tpu.matmul %0, %14, %cst_12 {dimension_numbers = #tpu.dot_dimension_numbers<[1], [0], [0], [1], [0, 0, 1, 1], [], []>} : vector<384x384xbf16>, vector<384x128xbf16>, vector<384x128xf32> -> vector<384x128xf32>
    %c0_13 = arith.constant 0 : index
    %c0_14 = arith.constant 0 : index
    %16 = vector.load %arg5[%c0_13, %c0_14] : memref<1x128xf32, #tpu.memory_space<vmem>>, vector<1x128xf32>
    %17 = vector.broadcast %16 : vector<1x128xf32> to vector<384x128xf32>
    %18 = arith.addf %15, %17 : vector<384x128xf32>
    %19 = tpu.iota {dimensions = array<i32: 1>} : vector<384x128xi32>
    %c4_i32 = arith.constant 4 : i32
    %20 = vector.broadcast %c4_i32 : i32 to vector<384x128xi32>
    %21 = arith.cmpi slt, %19, %20 : vector<384x128xi32>
    %cst_15 = arith.constant 0xFF800000 : f32
    %22 = vector.broadcast %cst_15 : f32 to vector<384x128xf32>
    %23 = arith.select %21, %18, %22 : vector<384x128xi1>, vector<384x128xf32>
    %cst_16 = arith.constant dense<0xFF800000> : vector<384xf32>
    %24 = vector.multi_reduction <maximumf>, %23, %cst_16 [1] : vector<384x128xf32> to vector<384xf32>
    %25 = vector.shape_cast %24 : vector<384xf32> to vector<384x1xf32>
    %26 = vector.broadcast %25 : vector<384x1xf32> to vector<384x128xf32>
    %27 = arith.subf %23, %26 : vector<384x128xf32>
    %28 = math.exp %27 : vector<384x128xf32>
    %cst_17 = arith.constant dense<0.000000e+00> : vector<384xf32>
    %29 = vector.multi_reduction <add>, %28, %cst_17 [1] : vector<384x128xf32> to vector<384xf32>
    %30 = vector.shape_cast %29 : vector<384xf32> to vector<384x1xf32>
    %31 = math.log %30 : vector<384x1xf32>
    %32 = vector.broadcast %31 : vector<384x1xf32> to vector<384x128xf32>
    %33 = arith.subf %27, %32 : vector<384x128xf32>
    %c0_18 = arith.constant 0 : index
    %c0_19 = arith.constant 0 : index
    %34 = vector.load %arg6[%c0_18, %c0_19] : memref<384x128xf32, #tpu.memory_space<vmem>>, vector<384x128xf32>
    tpu.vector_store %arg6[%c0_18, %c0_19], %33 {strides = array<i32>} : memref<384x128xf32, #tpu.memory_space<vmem>>, vector<384x128xf32>,
    return
  }
}

</mosaic_0001>

<llo_original>
// kernel: gcn_forward_padded.1
$region0: #{gcn_forward_padded.1}
  #allocation0 [shape = 'u32[]', space=smem, size = 0x4, offset = 0x4, fixed_abs, tag = 'smem constant byte address 0x4 - core index']
  #allocation1 [shape = 'u32[144,128]{1,0:T(1,128)}', space=vmem, size = 0x12000, scoped, tag = 'internal scratch']
  %s0 = inlined_call_operand.hbm [shape: bf16[384,384], index: 0, kind: input, shape index: {}]
  %s1 = inlined_call_operand.vmem [shape: bf16[384,8], index: 1, kind: input, shape index: {}]
  %s2 = inlined_call_operand.vmem [shape: bf16[8,128], index: 2, kind: input, shape index: {}]
  %s3 = inlined_call_operand.vmem [shape: f32[1,128], index: 3, kind: input, shape index: {}]
  %s4 = inlined_call_operand.vmem [shape: bf16[128,128], index: 4, kind: input, shape index: {}]
  %s5 = inlined_call_operand.vmem [shape: f32[1,128], index: 5, kind: input, shape index: {}]
  %s6 = inlined_call_operand.vmem [shape: f32[384,128], index: 6, kind: output, shape index: {}]
  %s7 = sld [smem:[#allocation0]]
  $region38: #{gcn_forward_padded.1} parent=0
    _
  %s9 = ssub.s32 1, %s7
  %s10 = scalar_select 0, %s9, %s7
  $region1: #{gcn_forward_padded.1} parent=0
    #allocation2 [shape = 'u8[294912]{0}', space=vmem, size = 0x48000, scoped, tag = 'input window, operand 0, single buffered']
    #allocation3 [shape = 's32[1]{0}', space=sflag, size = 0x4, scoped, tag = 'scoped memory for gcn_forward_padded.1']
    %11 = vsyncpa [#allocation3], 0
    // Predicated region
    $region2: #{gcn_forward_padded.1} parent=1 // pred_check
      _
    $region3: #{gcn_forward_padded.1} parent=1 // pred_check_branch
      %13 = sbr.rel (0) target = $region5
    $region4: #{gcn_forward_padded.1} parent=1 // pred_region
      %s15 = ssub.s32 9216, 9216
      %16 = vsyncadd [#allocation3], %s15
      %s17 = sshll.u32 [#allocation2], 4
      %s18 = int_to_ptr.vmem [resolvable:$true] %s17
      %23 = dma.hbm_to_vmem [thread:$0]  %s0, 9216, %s18, [#allocation3], 192, 192, 12
    $region5: #{gcn_forward_padded.1} parent=1 // pred_fallthru
      _
    // Predicated region
    $region6: #{gcn_forward_padded.1} parent=1 // pred_check
      _
    $region7: #{gcn_forward_padded.1} parent=1 // pred_check_branch
      %25 = sbr.rel (0) target = $region9
    $region8: #{gcn_forward_padded.1} parent=1 // pred_region
      _
    $region9: #{gcn_forward_padded.1} parent=1 // pred_fallthru
      _
    // Predicated region
    $region10: #{gcn_forward_padded.1} parent=1 // pred_check
      _
    $region11: #{gcn_forward_padded.1} parent=1 // pred_check_branch
      %27 = sbr.rel (0) target = $region13
    $region12: #{gcn_forward_padded.1} parent=1 // pred_region
      _
    $region13: #{gcn_forward_padded.1} parent=1 // pred_fallthru
      _
    // Predicated region
    $region14: #{gcn_forward_padded.1} parent=1 // pred_check
      _
    $region15: #{gcn_forward_padded.1} parent=1 // pred_check_branch
      %29 = sbr.rel (0) target = $region17
    $region16: #{gcn_forward_padded.1} parent=1 // pred_region
      _
    $region17: #{gcn_forward_padded.1} parent=1 // pred_fallthru
      _
    // Predicated region
    $region18: #{gcn_forward_padded.1} parent=1 // pred_check
      _
    $region19: #{gcn_forward_padded.1} parent=1 // pred_check_branch
      %31 = sbr.rel (0) target = $region21
    $region20: #{gcn_forward_padded.1} parent=1 // pred_region
      _
    $region21: #{gcn_forward_padded.1} parent=1 // pred_fallthru
      _
    // Predicated region
    $region22: #{gcn_forward_padded.1} parent=1 // pred_check
      _
    $region23: #{gcn_forward_padded.1} parent=1 // pred_check_branch
      %33 = sbr.rel (0) target = $region25
    $region24: #{gcn_forward_padded.1} parent=1 // pred_region
      _
    $region25: #{gcn_forward_padded.1} parent=1 // pred_fallthru
      _
    // Predicated region
    $region26: #{gcn_forward_padded.1} parent=1 // pred_check
      _
    $region27: #{gcn_forward_padded.1} parent=1 // pred_check_branch
      %35 = sbr.rel (0) target = $region29
    $region28: #{gcn_forward_padded.1} parent=1 // pred_region
      %36 = dma.done [#allocation3], 9216
    $region29: #{gcn_forward_padded.1} parent=1 // pred_fallthru
      _
    %v38 = vld [vmem:[#allocation2] sm:$0xff]
    %v39 = vld [vmem:[#allocation2 + $0x8] sm:$0xf]
    %v40 = vld [vmem:[#allocation2 + $0xc] sm:$0xff]
    %v41 = vld [vmem:[#allocation2 + $0x14] sm:$0xf]
    %v42 = vld [vmem:[#allocation2 + $0x18] sm:$0xff]
    %v43 = vld [vmem:[#allocation2 + $0x20] sm:$0xf]
    %v44 = vld [vmem:[#allocation2 + $0x24] sm:$0xff]
    %v45 = vld [vmem:[#allocation2 + $0x2c] sm:$0xf]
    %v46 = vld [vmem:[#allocation2 + $0x30] sm:$0xff]
    %v47 = vld [vmem:[#allocation2 + $0x38] sm:$0xf]
    %v48 = vld [vmem:[#allocation2 + $0x3c] sm:$0xff]
    %v49 = vld [vmem:[#allocation2 + $0x44] sm:$0xf]
    %v50 = vld [vmem:[#allocation2 + $0x48] sm:$0xff]
    %v51 = vld [vmem:[#allocation2 + $0x50] sm:$0xf]
    %v52 = vld [vmem:[#allocation2 + $0x54] sm:$0xff]
    %v53 = vld [vmem:[#allocation2 + $0x5c] sm:$0xf]
    %v54 = vld [vmem:[#allocation2 + $0x60] sm:$0xff]
    %v55 = vld [vmem:[#allocation2 + $0x68] sm:$0xf]
    %v56 = vld [vmem:[#allocation2 + $0x6c] sm:$0xff]
    %v57 = vld [vmem:[#allocation2 + $0x74] sm:$0xf]
    %v58 = vld [vmem:[#allocation2 + $0x78] sm:$0xff]
    %v59 = vld [vmem:[#allocation2 + $0x80] sm:$0xf]
    %v60 = vld [vmem:[#allocation2 + $0x84] sm:$0xff]
    %v61 = vld [vmem:[#allocation2 + $0x8c] sm:$0xf]
    %v62 = vld [vmem:[#allocation2 + $0x90] sm:$0xff]
    %v63 = vld [vmem:[#allocation2 + $0x98] sm:$0xf]
    %v64 = vld [vmem:[#allocation2 + $0x9c] sm:$0xff]
    %v65 = vld [vmem:[#allocation2 + $0xa4] sm:$0xf]
    %v66 = vld [vmem:[#allocation2 + $0xa8] sm:$0xff]
    %v67 = vld [vmem:[#allocation2 + $0xb0] sm:$0xf]
    %v68 = vld [vmem:[#allocation2 + $0xb4] sm:$0xff]
    %v69 = vld [vmem:[#allocation2 + $0xbc] sm:$0xf]
    %v70 = vld [vmem:[#allocation2 + $0xc0] sm:$0xff]
    %v71 = vld [vmem:[#allocation2 + $0xc8] sm:$0xf]
    %v72 = vld [vmem:[#allocation2 + $0xcc] sm:$0xff]
    %v73 = vld [vmem:[#allocation2 + $0xd4] sm:$0xf]
    %v74 = vld [vmem:[#allocation2 + $0xd8] sm:$0xff]
    %v75 = vld [vmem:[#allocation2 + $0xe0] sm:$0xf]
    %v76 = vld [vmem:[#allocation2 + $0xe4] sm:$0xff]
    %v77 = vld [vmem:[#allocation2 + $0xec] sm:$0xf]
    %v78 = vld [vmem:[#allocation2 + $0xf0] sm:$0xff]
    %v79 = vld [vmem:[#allocation2 + $0xf8] sm:$0xf]
    %v80 = vld [vmem:[#allocation2 + $0xfc] sm:$0xff]
    %v81 = vld [vmem:[#allocation2 + $0x104] sm:$0xf]
    %v82 = vld [vmem:[#allocation2 + $0x108] sm:$0xff]
    %v83 = vld [vmem:[#allocation2 + $0x110] sm:$0xf]
    %v84 = vld [vmem:[#allocation2 + $0x114] sm:$0xff]
    %v85 = vld [vmem:[#allocation2 + $0x11c] sm:$0xf]
    %v86 = vld [vmem:[#allocation2 + $0x120] sm:$0xff]
    %v87 = vld [vmem:[#allocation2 + $0x128] sm:$0xf]
    %v88 = vld [vmem:[#allocation2 + $0x12c] sm:$0xff]
    %v89 = vld [vmem:[#allocation2 + $0x134] sm:$0xf]
    %v90 = vld [vmem:[#allocation2 + $0x138] sm:$0xff]
    %v91 = vld [vmem:[#allocation2 + $0x140] sm:$0xf]
    %v92 = vld [vmem:[#allocation2 + $0x144] sm:$0xff]
    %v93 = vld [vmem:[#allocation2 + $0x14c] sm:$0xf]
    %v94 = vld [vmem:[#allocation2 + $0x150] sm:$0xff]
    %v95 = vld [vmem:[#allocation2 + $0x158] sm:$0xf]
    %v96 = vld [vmem:[#allocation2 + $0x15c] sm:$0xff]
    %v97 = vld [vmem:[#allocation2 + $0x164] sm:$0xf]
    %v98 = vld [vmem:[#allocation2 + $0x168] sm:$0xff]
    %v99 = vld [vmem:[#allocation2 + $0x170] sm:$0xf]
    %v100 = vld [vmem:[#allocation2 + $0x174] sm:$0xff]
    %v101 = vld [vmem:[#allocation2 + $0x17c] sm:$0xf]
    %v102 = vld [vmem:[#allocation2 + $0x180] sm:$0xff]
    %v103 = vld [vmem:[#allocation2 + $0x188] sm:$0xf]
    %v104 = vld [vmem:[#allocation2 + $0x18c] sm:$0xff]
    %v105 = vld [vmem:[#allocation2 + $0x194] sm:$0xf]
    %v106 = vld [vmem:[#allocation2 + $0x198] sm:$0xff]
    %v107 = vld [vmem:[#allocation2 + $0x1a0] sm:$0xf]
    %v108 = vld [vmem:[#allocation2 + $0x1a4] sm:$0xff]
    %v109 = vld [vmem:[#allocation2 + $0x1ac] sm:$0xf]
    %v110 = vld [vmem:[#allocation2 + $0x1b0] sm:$0xff]
    %v111 = vld [vmem:[#allocation2 + $0x1b8] sm:$0xf]
    %v112 = vld [vmem:[#allocation2 + $0x1bc] sm:$0xff]
    %v113 = vld [vmem:[#allocation2 + $0x1c4] sm:$0xf]
    %v114 = vld [vmem:[#allocation2 + $0x1c8] sm:$0xff]
    %v115 = vld [vmem:[#allocation2 + $0x1d0] sm:$0xf]
    %v116 = vld [vmem:[#allocation2 + $0x1d4] sm:$0xff]
    %v117 = vld [vmem:[#allocation2 + $0x1dc] sm:$0xf]
    %v118 = vld [vmem:[#allocation2 + $0x1e0] sm:$0xff]
    %v119 = vld [vmem:[#allocation2 + $0x1e8] sm:$0xf]
    %v120 = vld [vmem:[#allocation2 + $0x1ec] sm:$0xff]
    %v121 = vld [vmem:[#allocation2 + $0x1f4] sm:$0xf]
    %v122 = vld [vmem:[#allocation2 + $0x1f8] sm:$0xff]
    %v123 = vld [vmem:[#allocation2 + $0x200] sm:$0xf]
    %v124 = vld [vmem:[#allocation2 + $0x204] sm:$0xff]
    %v125 = vld [vmem:[#allocation2 + $0x20c] sm:$0xf]
    %v126 = vld [vmem:[#allocation2 + $0x210] sm:$0xff]
    %v127 = vld [vmem:[#allocation2 + $0x218] sm:$0xf]
    %v128 = vld [vmem:[#allocation2 + $0x21c] sm:$0xff]
    %v129 = vld [vmem:[#allocation2 + $0x224] sm:$0xf]
    %v130 = vld [vmem:[#allocation2 + $0x228] sm:$0xff]
    %v131 = vld [vmem:[#allocation2 + $0x230] sm:$0xf]
    %v132 = vld [vmem:[#allocation2 + $0x234] sm:$0xff]
    %v133 = vld [vmem:[#allocation2 + $0x23c] sm:$0xf]
    %v134 = vld [vmem:[%s1] sm:$0xf]
    %v135 = vld [vmem:[%s1 + $0x4] sm:$0xf]
    %v136 = vld [vmem:[%s1 + $0x8] sm:$0xf]
    %v137 = vld [vmem:[%s1 + $0xc] sm:$0xf]
    %v138 = vld [vmem:[%s1 + $0x10] sm:$0xf]
    %v139 = vld [vmem:[%s1 + $0x14] sm:$0xf]
    %v140 = vld [vmem:[%s1 + $0x18] sm:$0xf]
    %v141 = vld [vmem:[%s1 + $0x1c] sm:$0xf]
    %v142 = vld [vmem:[%s1 + $0x20] sm:$0xf]
    %v143 = vld [vmem:[%s1 + $0x24] sm:$0xf]
    %v144 = vld [vmem:[%s1 + $0x28] sm:$0xf]
    %v145 = vld [vmem:[%s1 + $0x2c] sm:$0xf]
    %v146 = vld [vmem:[%s1 + $0x30] sm:$0xf]
    %v147 = vld [vmem:[%s1 + $0x34] sm:$0xf]
    %v148 = vld [vmem:[%s1 + $0x38] sm:$0xf]
    %v149 = vld [vmem:[%s1 + $0x3c] sm:$0xf]
    %v150 = vld [vmem:[%s1 + $0x40] sm:$0xf]
    %v151 = vld [vmem:[%s1 + $0x44] sm:$0xf]
    %v152 = vld [vmem:[%s1 + $0x48] sm:$0xf]
    %v153 = vld [vmem:[%s1 + $0x4c] sm:$0xf]
    %v154 = vld [vmem:[%s1 + $0x50] sm:$0xf]
    %v155 = vld [vmem:[%s1 + $0x54] sm:$0xf]
    %v156 = vld [vmem:[%s1 + $0x58] sm:$0xf]
    %v157 = vld [vmem:[%s1 + $0x5c] sm:$0xf]
    %v158 = vld [vmem:[%s1 + $0x60] sm:$0xf]
    %v159 = vld [vmem:[%s1 + $0x64] sm:$0xf]
    %v160 = vld [vmem:[%s1 + $0x68] sm:$0xf]
    %v161 = vld [vmem:[%s1 + $0x6c] sm:$0xf]
    %v162 = vld [vmem:[%s1 + $0x70] sm:$0xf]
    %v163 = vld [vmem:[%s1 + $0x74] sm:$0xf]
    %v164 = vld [vmem:[%s1 + $0x78] sm:$0xf]
    %v165 = vld [vmem:[%s1 + $0x7c] sm:$0xf]
    %v166 = vld [vmem:[%s1 + $0x80] sm:$0xf]
    %v167 = vld [vmem:[%s1 + $0x84] sm:$0xf]
    %v168 = vld [vmem:[%s1 + $0x88] sm:$0xf]
    %v169 = vld [vmem:[%s1 + $0x8c] sm:$0xf]
    %v170 = vld [vmem:[%s1 + $0x90] sm:$0xf]
    %v171 = vld [vmem:[%s1 + $0x94] sm:$0xf]
    %v172 = vld [vmem:[%s1 + $0x98] sm:$0xf]
    %v173 = vld [vmem:[%s1 + $0x9c] sm:$0xf]
    %v174 = vld [vmem:[%s1 + $0xa0] sm:$0xf]
    %v175 = vld [vmem:[%s1 + $0xa4] sm:$0xf]
    %v176 = vld [vmem:[%s1 + $0xa8] sm:$0xf]
    %v177 = vld [vmem:[%s1 + $0xac] sm:$0xf]
    %v178 = vld [vmem:[%s1 + $0xb0] sm:$0xf]
    %v179 = vld [vmem:[%s1 + $0xb4] sm:$0xf]
    %v180 = vld [vmem:[%s1 + $0xb8] sm:$0xf]
    %v181 = vld [vmem:[%s1 + $0xbc] sm:$0xf]
    %v182 = vld [vmem:[%s2] sm:$0xf]
    %v231 = vunpack.c.l.b16 %v134
    %v232 = vunpack.c.l.b16 %v135
    %v233 = vunpack.c.l.b16 %v136
    %v234 = vunpack.c.l.b16 %v137
    %v235 = vunpack.c.l.b16 %v138
    %v236 = vunpack.c.l.b16 %v139
    %v237 = vunpack.c.l.b16 %v140
    %v238 = vunpack.c.l.b16 %v141
    %v239 = vunpack.c.l.b16 %v142
    %v240 = vunpack.c.l.b16 %v143
    %v241 = vunpack.c.l.b16 %v144
    %v242 = vunpack.c.l.b16 %v145
    %v243 = vunpack.c.l.b16 %v146
    %v244 = vunpack.c.l.b16 %v147
    %v245 = vunpack.c.l.b16 %v148
    %v246 = vunpack.c.l.b16 %v149
    %v247 = vunpack.c.l.b16 %v150
    %v248 = vunpack.c.l.b16 %v151
    %v249 = vunpack.c.l.b16 %v152
    %v250 = vunpack.c.l.b16 %v153
    %v251 = vunpack.c.l.b16 %v154
    %v252 = vunpack.c.l.b16 %v155
    %v253 = vunpack.c.l.b16 %v156
    %v254 = vunpack.c.l.b16 %v157
    %v255 = vunpack.c.l.b16 %v158
    %v256 = vunpack.c.l.b16 %v159
    %v257 = vunpack.c.l.b16 %v160
    %v258 = vunpack.c.l.b16 %v161
    %v259 = vunpack.c.l.b16 %v162
    %v260 = vunpack.c.l.b16 %v163
    %v261 = vunpack.c.l.b16 %v164
    %v262 = vunpack.c.l.b16 %v165
    %v263 = vunpack.c.l.b16 %v166
    %v264 = vunpack.c.l.b16 %v167
    %v265 = vunpack.c.l.b16 %v168
    %v266 = vunpack.c.l.b16 %v169
    %v267 = vunpack.c.l.b16 %v170
    %v268 = vunpack.c.l.b16 %v171
    %v269 = vunpack.c.l.b16 %v172
    %v270 = vunpack.c.l.b16 %v173
    %v271 = vunpack.c.l.b16 %v174
    %v272 = vunpack.c.l.b16 %v175
    %v273 = vunpack.c.l.b16 %v176
    %v274 = vunpack.c.l.b16 %v177
    %v275 = vunpack.c.l.b16 %v178
    %v276 = vunpack.c.l.b16 %v179
    %v277 = vunpack.c.l.b16 %v180
    %v278 = vunpack.c.l.b16 %v181
    %v279 = vpack.c.b16 %v232, %v231
    %v280 = vpack.c.b16 %v234, %v233
    %v281 = vpack.c.b16 %v236, %v235
    %v282 = vpack.c.b16 %v238, %v237
    %v283 = vpack.c.b16 %v240, %v239
    %v284 = vpack.c.b16 %v242, %v241
    %v285 = vpack.c.b16 %v244, %v243
    %v286 = vpack.c.b16 %v246, %v245
    %v287 = vpack.c.b16 %v248, %v247
    %v288 = vpack.c.b16 %v250, %v249
    %v289 = vpack.c.b16 %v252, %v251
    %v290 = vpack.c.b16 %v254, %v253
    %v291 = vpack.c.b16 %v256, %v255
    %v292 = vpack.c.b16 %v258, %v257
    %v293 = vpack.c.b16 %v260, %v259
    %v294 = vpack.c.b16 %v262, %v261
    %v295 = vpack.c.b16 %v264, %v263
    %v296 = vpack.c.b16 %v266, %v265
    %v297 = vpack.c.b16 %v268, %v267
    %v298 = vpack.c.b16 %v270, %v269
    %v299 = vpack.c.b16 %v272, %v271
    %v300 = vpack.c.b16 %v274, %v273
    %v301 = vpack.c.b16 %v276, %v275
    %v302 = vpack.c.b16 %v278, %v277
    %vm303 = vcmask 64512
    %v305 = vsel %vm303, %v279, 0
    %v308 = vsel %vm303, %v280, 0
    %v311 = vsel %vm303, %v281, 0
    %v314 = vsel %vm303, %v282, 0
    %v317 = vsel %vm303, %v283, 0
    %v320 = vsel %vm303, %v284, 0
    %v323 = vsel %vm303, %v285, 0
    %v326 = vsel %vm303, %v286, 0
    %v329 = vsel %vm303, %v287, 0
    %v332 = vsel %vm303, %v288, 0
    %v335 = vsel %vm303, %v289, 0
    %v338 = vsel %vm303, %v290, 0
    %v341 = vsel %vm303, %v291, 0
    %v344 = vsel %vm303, %v292, 0
    %v347 = vsel %vm303, %v293, 0
    %v350 = vsel %vm303, %v294, 0
    %v353 = vsel %vm303, %v295, 0
    %v356 = vsel %vm303, %v296, 0
    %v359 = vsel %vm303, %v297, 0
    %v362 = vsel %vm303, %v298, 0
    %v365 = vsel %vm303, %v299, 0
    %v368 = vsel %vm303, %v300, 0
    %v371 = vsel %vm303, %v301, 0
    %v374 = vsel %vm303, %v302, 0
    %vm376 = vcmask 1043456
    %v378 = vsel %vm376, %v182, 0
    %380 = vmatprep.subr.bf16.mxu0 0
    %381 = vmatpush1.bf16.msra.mxu0 0
    %382 = vmatprep.subr.bf16.mxu0 0
    %383 = vmatpush1.bf16.msra.mxu0 0
    %384 = vmatprep.subr.bf16.mxu0 0
    %385 = vmatpush1.bf16.msra.mxu0 0
    %386 = vmatprep.subr.bf16.mxu0 0
    %387 = vmatpush1.bf16.msra.mxu0 0
    %388 = vmatprep.subr.bf16.mxu0 0
    %389 = vmatpush1.bf16.msra.mxu0 0
    %390 = vmatprep.subr.bf16.mxu0 0
    %391 = vmatpush1.bf16.msra.mxu0 0
    %392 = vmatprep.subr.bf16.mxu0 0
    %393 = vmatpush1.bf16.msra.mxu0 0
    %394 = vmatprep.subr.bf16.mxu0 0
    %395 = vmatpush1.bf16.msra.mxu0 %v378
    %396 = vmatprep.subr.bf16.mxu0 0
    %397 = vmatpush2.bf16.msra.mxu0 0
    %398 = vmatprep.subr.bf16.mxu0 0
    %399 = vmatpush2.bf16.msra.mxu0 0
    %400 = vmatprep.subr.bf16.mxu0 0
    %401 = vmatpush2.bf16.msra.mxu0 0
    %402 = vmatprep.subr.bf16.mxu0 0
    %403 = vmatpush2.bf16.msra.mxu0 0
    %404 = vmatprep.subr.bf16.mxu0 0
    %405 = vmatpush2.bf16.msra.mxu0 0
    %406 = vmatprep.subr.bf16.mxu0 0
    %407 = vmatpush2.bf16.msra.mxu0 0
    %408 = vmatprep.subr.bf16.mxu0 0
    %409 = vmatpush2.bf16.msra.mxu0 0
    %410 = vmatprep.subr.bf16.mxu0 0
    %411 = vmatpush2.bf16.msra.mxu0 0
    %412 = vmatprep.mubr.bf16.mxu0 0
    %413 = vmatmul.mubr.bf16.gmra.mxu0 %v305
    %v414 = vpop.f32.mrf.mxu0
    %v415 = vadd.f32 0.0, %v414
    %v416 = vpop.f32.mrf.mxu0
    %v417 = vpop.f32.mrf.mxu0
    %v418 = vadd.f32 0.0, %v417
    %v419 = vpop.f32.mrf.mxu0
    %420 = vmatprep.mubr.bf16.mxu0 0
    %421 = vmatmul.mubr.bf16.gmra.mxu0 %v308
    %v422 = vpop.f32.mrf.mxu0
    %v423 = vadd.f32 0.0, %v422
    %v424 = vpop.f32.mrf.mxu0
    %v425 = vpop.f32.mrf.mxu0
    %v426 = vadd.f32 0.0, %v425
    %v427 = vpop.f32.mrf.mxu0
    %428 = vmatprep.mubr.bf16.mxu0 0
    %429 = vmatmul.mubr.bf16.gmra.mxu0 %v311
    %v430 = vpop.f32.mrf.mxu0
    %v431 = vadd.f32 0.0, %v430
    %v432 = vpop.f32.mrf.mxu0
    %v433 = vpop.f32.mrf.mxu0
    %v434 = vadd.f32 0.0, %v433
    %v435 = vpop.f32.mrf.mxu0
    %436 = vmatprep.mubr.bf16.mxu0 0
    %437 = vmatmul.mubr.bf16.gmra.mxu0 %v314
    %v438 = vpop.f32.mrf.mxu0
    %v439 = vadd.f32 0.0, %v438
    %v440 = vpop.f32.mrf.mxu0
    %v441 = vpop.f32.mrf.mxu0
    %v442 = vadd.f32 0.0, %v441
    %v443 = vpop.f32.mrf.mxu0
    %444 = vmatprep.mubr.bf16.mxu0 0
    %445 = vmatmul.mubr.bf16.gmra.mxu0 %v317
    %v446 = vpop.f32.mrf.mxu0
    %v447 = vadd.f32 0.0, %v446
    %v448 = vpop.f32.mrf.mxu0
    %v449 = vpop.f32.mrf.mxu0
    %v450 = vadd.f32 0.0, %v449
    %v451 = vpop.f32.mrf.mxu0
    %452 = vmatprep.mubr.bf16.mxu0 0
    %453 = vmatmul.mubr.bf16.gmra.mxu0 %v320
    %v454 = vpop.f32.mrf.mxu0
    %v455 = vadd.f32 0.0, %v454
    %v456 = vpop.f32.mrf.mxu0
    %v457 = vpop.f32.mrf.mxu0
    %v458 = vadd.f32 0.0, %v457
    %v459 = vpop.f32.mrf.mxu0
    %460 = vmatprep.mubr.bf16.mxu0 0
    %461 = vmatmul.mubr.bf16.gmra.mxu0 %v323
    %v462 = vpop.f32.mrf.mxu0
    %v463 = vadd.f32 0.0, %v462
    %v464 = vpop.f32.mrf.mxu0
    %v465 = vpop.f32.mrf.mxu0
    %v466 = vadd.f32 0.0, %v465
    %v467 = vpop.f32.mrf.mxu0
    %468 = vmatprep.mubr.bf16.mxu0 0
    %469 = vmatmul.mubr.bf16.gmra.mxu0 %v326
    %v470 = vpop.f32.mrf.mxu0
    %v471 = vadd.f32 0.0, %v470
    %v472 = vpop.f32.mrf.mxu0
    %v473 = vpop.f32.mrf.mxu0
    %v474 = vadd.f32 0.0, %v473
    %v475 = vpop.f32.mrf.mxu0
    %476 = vmatprep.mubr.bf16.mxu0 0
    %477 = vmatmul.mubr.bf16.gmra.mxu0 %v329
    %v478 = vpop.f32.mrf.mxu0
    %v479 = vadd.f32 0.0, %v478
    %v480 = vpop.f32.mrf.mxu0
    %v481 = vpop.f32.mrf.mxu0
    %v482 = vadd.f32 0.0, %v481
    %v483 = vpop.f32.mrf.mxu0
    %484 = vmatprep.mubr.bf16.mxu0 0
    %485 = vmatmul.mubr.bf16.gmra.mxu0 %v332
    %v486 = vpop.f32.mrf.mxu0
    %v487 = vadd.f32 0.0, %v486
    %v488 = vpop.f32.mrf.mxu0
    %v489 = vpop.f32.mrf.mxu0
    %v490 = vadd.f32 0.0, %v489
    %v491 = vpop.f32.mrf.mxu0
    %492 = vmatprep.mubr.bf16.mxu0 0
    %493 = vmatmul.mubr.bf16.gmra.mxu0 %v335
    %v494 = vpop.f32.mrf.mxu0
    %v495 = vadd.f32 0.0, %v494
    %v496 = vpop.f32.mrf.mxu0
    %v497 = vpop.f32.mrf.mxu0
    %v498 = vadd.f32 0.0, %v497
    %v499 = vpop.f32.mrf.mxu0
    %500 = vmatprep.mubr.bf16.mxu0 0
    %501 = vmatmul.mubr.bf16.gmra.mxu0 %v338
    %v502 = vpop.f32.mrf.mxu0
    %v503 = vadd.f32 0.0, %v502
    %v504 = vpop.f32.mrf.mxu0
    %v505 = vpop.f32.mrf.mxu0
    %v506 = vadd.f32 0.0, %v505
    %v507 = vpop.f32.mrf.mxu0
    %508 = vmatprep.mubr.bf16.mxu0 0
    %509 = vmatmul.mubr.bf16.gmra.mxu0 %v341
    %v510 = vpop.f32.mrf.mxu0
    %v511 = vadd.f32 0.0, %v510
    %v512 = vpop.f32.mrf.mxu0
    %v513 = vpop.f32.mrf.mxu0
    %v514 = vadd.f32 0.0, %v513
    %v515 = vpop.f32.mrf.mxu0
    %516 = vmatprep.mubr.bf16.mxu0 0
    %517 = vmatmul.mubr.bf16.gmra.mxu0 %v344
    %v518 = vpop.f32.mrf.mxu0
    %v519 = vadd.f32 0.0, %v518
    %v520 = vpop.f32.mrf.mxu0
    %v521 = vpop.f32.mrf.mxu0
    %v522 = vadd.f32 0.0, %v521
    %v523 = vpop.f32.mrf.mxu0
    %524 = vmatprep.mubr.bf16.mxu0 0
    %525 = vmatmul.mubr.bf16.gmra.mxu0 %v347
    %v526 = vpop.f32.mrf.mxu0
    %v527 = vadd.f32 0.0, %v526
    %v528 = vpop.f32.mrf.mxu0
    %v529 = vpop.f32.mrf.mxu0
    %v530 = vadd.f32 0.0, %v529
    %v531 = vpop.f32.mrf.mxu0
    %532 = vmatprep.mubr.bf16.mxu0 0
    %533 = vmatmul.mubr.bf16.gmra.mxu0 %v350
    %v534 = vpop.f32.mrf.mxu0
    %v535 = vadd.f32 0.0, %v534
    %v536 = vpop.f32.mrf.mxu0
    %v537 = vpop.f32.mrf.mxu0
    %v538 = vadd.f32 0.0, %v537
    %v539 = vpop.f32.mrf.mxu0
    %540 = vmatprep.mubr.bf16.mxu0 0
    %541 = vmatmul.mubr.bf16.gmra.mxu0 %v353
    %v542 = vpop.f32.mrf.mxu0
    %v543 = vadd.f32 0.0, %v542
    %v544 = vpop.f32.mrf.mxu0
    %v545 = vpop.f32.mrf.mxu0
    %v546 = vadd.f32 0.0, %v545
    %v547 = vpop.f32.mrf.mxu0
    %548 = vmatprep.mubr.bf16.mxu0 0
    %549 = vmatmul.mubr.bf16.gmra.mxu0 %v356
    %v550 = vpop.f32.mrf.mxu0
    %v551 = vadd.f32 0.0, %v550
    %v552 = vpop.f32.mrf.mxu0
    %v553 = vpop.f32.mrf.mxu0
    %v554 = vadd.f32 0.0, %v553
    %v555 = vpop.f32.mrf.mxu0
    %556 = vmatprep.mubr.bf16.mxu0 0
    %557 = vmatmul.mubr.bf16.gmra.mxu0 %v359
    %v558 = vpop.f32.mrf.mxu0
    %v559 = vadd.f32 0.0, %v558
    %v560 = vpop.f32.mrf.mxu0
    %v561 = vpop.f32.mrf.mxu0
    %v562 = vadd.f32 0.0, %v561
    %v563 = vpop.f32.mrf.mxu0
    %564 = vmatprep.mubr.bf16.mxu0 0
    %565 = vmatmul.mubr.bf16.gmra.mxu0 %v362
    %v566 = vpop.f32.mrf.mxu0
    %v567 = vadd.f32 0.0, %v566
    %v568 = vpop.f32.mrf.mxu0
    %v569 = vpop.f32.mrf.mxu0
    %v570 = vadd.f32 0.0, %v569
    %v571 = vpop.f32.mrf.mxu0
    %572 = vmatprep.mubr.bf16.mxu0 0
    %573 = vmatmul.mubr.bf16.gmra.mxu0 %v365
    %v574 = vpop.f32.mrf.mxu0
    %v575 = vadd.f32 0.0, %v574
    %v576 = vpop.f32.mrf.mxu0
    %v577 = vpop.f32.mrf.mxu0
    %v578 = vadd.f32 0.0, %v577
    %v579 = vpop.f32.mrf.mxu0
    %580 = vmatprep.mubr.bf16.mxu0 0
    %581 = vmatmul.mubr.bf16.gmra.mxu0 %v368
    %v582 = vpop.f32.mrf.mxu0
    %v583 = vadd.f32 0.0, %v582
    %v584 = vpop.f32.mrf.mxu0
    %v585 = vpop.f32.mrf.mxu0
    %v586 = vadd.f32 0.0, %v585
    %v587 = vpop.f32.mrf.mxu0
    %588 = vmatprep.mubr.bf16.mxu0 0
    %589 = vmatmul.mubr.bf16.gmra.mxu0 %v371
    %v590 = vpop.f32.mrf.mxu0
    %v591 = vadd.f32 0.0, %v590
    %v592 = vpop.f32.mrf.mxu0
    %v593 = vpop.f32.mrf.mxu0
    %v594 = vadd.f32 0.0, %v593
    %v595 = vpop.f32.mrf.mxu0
    %596 = vmatprep.mubr.bf16.mxu0 0
    %597 = vmatmul.mubr.bf16.gmra.mxu0 %v374
    %v598 = vpop.f32.mrf.mxu0
    %v599 = vadd.f32 0.0, %v598
    %v600 = vpop.f32.mrf.mxu0
    %v601 = vpop.f32.mrf.mxu0
    %v602 = vadd.f32 0.0, %v601
    %v603 = vpop.f32.mrf.mxu0
    %604 = vdwg.mxu0
    %v605 = vpack.c.bf16 %v418, %v415
    %v606 = vpack.c.bf16 %v426, %v423
    %v607 = vpack.c.bf16 %v434, %v431
    %v608 = vpack.c.bf16 %v442, %v439
    %v609 = vpack.c.bf16 %v450, %v447
    %v610 = vpack.c.bf16 %v458, %v455
    %v611 = vpack.c.bf16 %v466, %v463
    %v612 = vpack.c.bf16 %v474, %v471
    %v613 = vpack.c.bf16 %v482, %v479
    %v614 = vpack.c.bf16 %v490, %v487
    %v615 = vpack.c.bf16 %v498, %v495
    %v616 = vpack.c.bf16 %v506, %v503
    %v617 = vpack.c.bf16 %v514, %v511
    %v618 = vpack.c.bf16 %v522, %v519
    %v619 = vpack.c.bf16 %v530, %v527
    %v620 = vpack.c.bf16 %v538, %v535
    %v621 = vpack.c.bf16 %v546, %v543
    %v622 = vpack.c.bf16 %v554, %v551
    %v623 = vpack.c.bf16 %v562, %v559
    %v624 = vpack.c.bf16 %v570, %v567
    %v625 = vpack.c.bf16 %v578, %v575
    %v626 = vpack.c.bf16 %v586, %v583
    %v627 = vpack.c.bf16 %v594, %v591
    %v628 = vpack.c.bf16 %v602, %v599
    %v629 = vld [vmem:[%s3] sm:$0x1]
    %v631 = vlaneseq
    %v632 = vshrl.u32 %v631, 7
    %v633 = vsub.s32 0, %v632
    %v634 = vrot.slane %v629, %v633
    %v732 = vunpack.c.l.b16 %v38
    %v733 = vunpack.c.h.b16 %v38
    %v734 = vunpack.c.l.b16 %v39
    %v735 = vunpack.c.l.b16 %v40
    %v736 = vunpack.c.h.b16 %v40
    %v737 = vunpack.c.l.b16 %v41
    %v738 = vunpack.c.l.b16 %v42
    %v739 = vunpack.c.h.b16 %v42
    %v740 = vunpack.c.l.b16 %v43
    %v741 = vunpack.c.l.b16 %v44
    %v742 = vunpack.c.h.b16 %v44
    %v743 = vunpack.c.l.b16 %v45
    %v744 = vunpack.c.l.b16 %v46
    %v745 = vunpack.c.h.b16 %v46
    %v746 = vunpack.c.l.b16 %v47
    %v747 = vunpack.c.l.b16 %v48
    %v748 = vunpack.c.h.b16 %v48
    %v749 = vunpack.c.l.b16 %v49
    %v750 = vunpack.c.l.b16 %v50
    %v751 = vunpack.c.h.b16 %v50
    %v752 = vunpack.c.l.b16 %v51
    %v753 = vunpack.c.l.b16 %v52
    %v754 = vunpack.c.h.b16 %v52
    %v755 = vunpack.c.l.b16 %v53
    %v756 = vunpack.c.l.b16 %v54
    %v757 = vunpack.c.h.b16 %v54
    %v758 = vunpack.c.l.b16 %v55
    %v759 = vunpack.c.l.b16 %v56
    %v760 = vunpack.c.h.b16 %v56
    %v761 = vunpack.c.l.b16 %v57
    %v762 = vunpack.c.l.b16 %v58
    %v763 = vunpack.c.h.b16 %v58
    %v764 = vunpack.c.l.b16 %v59
    %v765 = vunpack.c.l.b16 %v60
    %v766 = vunpack.c.h.b16 %v60
    %v767 = vunpack.c.l.b16 %v61
    %v768 = vunpack.c.l.b16 %v62
    %v769 = vunpack.c.h.b16 %v62
    %v770 = vunpack.c.l.b16 %v63
    %v771 = vunpack.c.l.b16 %v64
    %v772 = vunpack.c.h.b16 %v64
    %v773 = vunpack.c.l.b16 %v65
    %v774 = vunpack.c.l.b16 %v66
    %v775 = vunpack.c.h.b16 %v66
    %v776 = vunpack.c.l.b16 %v67
    %v777 = vunpack.c.l.b16 %v68
    %v778 = vunpack.c.h.b16 %v68
    %v779 = vunpack.c.l.b16 %v69
    %v780 = vunpack.c.l.b16 %v70
    %v781 = vunpack.c.h.b16 %v70
    %v782 = vunpack.c.l.b16 %v71
    %v783 = vunpack.c.l.b16 %v72
    %v784 = vunpack.c.h.b16 %v72
    %v785 = vunpack.c.l.b16 %v73
    %v786 = vunpack.c.l.b16 %v74
    %v787 = vunpack.c.h.b16 %v74
    %v788 = vunpack.c.l.b16 %v75
    %v789 = vunpack.c.l.b16 %v76
    %v790 = vunpack.c.h.b16 %v76
    %v791 = vunpack.c.l.b16 %v77
    %v792 = vunpack.c.l.b16 %v78
    %v793 = vunpack.c.h.b16 %v78
    %v794 = vunpack.c.l.b16 %v79
    %v795 = vunpack.c.l.b16 %v80
    %v796 = vunpack.c.h.b16 %v80
    %v797 = vunpack.c.l.b16 %v81
    %v798 = vunpack.c.l.b16 %v82
    %v799 = vunpack.c.h.b16 %v82
    %v800 = vunpack.c.l.b16 %v83
    %v801 = vunpack.c.l.b16 %v84
    %v802 = vunpack.c.h.b16 %v84
    %v803 = vunpack.c.l.b16 %v85
    %v804 = vunpack.c.l.b16 %v86
    %v805 = vunpack.c.h.b16 %v86
    %v806 = vunpack.c.l.b16 %v87
    %v807 = vunpack.c.l.b16 %v88
    %v808 = vunpack.c.h.b16 %v88
    %v809 = vunpack.c.l.b16 %v89
    %v810 = vunpack.c.l.b16 %v90
    %v811 = vunpack.c.h.b16 %v90
    %v812 = vunpack.c.l.b16 %v91
    %v813 = vunpack.c.l.b16 %v92
    %v814 = vunpack.c.h.b16 %v92
    %v815 = vunpack.c.l.b16 %v93
    %v816 = vunpack.c.l.b16 %v94
    %v817 = vunpack.c.h.b16 %v94
    %v818 = vunpack.c.l.b16 %v95
    %v819 = vunpack.c.l.b16 %v96
    %v820 = vunpack.c.h.b16 %v96
    %v821 = vunpack.c.l.b16 %v97
    %v822 = vunpack.c.l.b16 %v98
    %v823 = vunpack.c.h.b16 %v98
    %v824 = vunpack.c.l.b16 %v99
    %v825 = vunpack.c.l.b16 %v100
    %v826 = vunpack.c.h.b16 %v100
    %v827 = vunpack.c.l.b16 %v101
    %v828 = vunpack.c.l.b16 %v102
    %v829 = vunpack.c.h.b16 %v102
    %v830 = vunpack.c.l.b16 %v103
    %v831 = vunpack.c.l.b16 %v104
    %v832 = vunpack.c.h.b16 %v104
    %v833 = vunpack.c.l.b16 %v105
    %v834 = vunpack.c.l.b16 %v106
    %v835 = vunpack.c.h.b16 %v106
    %v836 = vunpack.c.l.b16 %v107
    %v837 = vunpack.c.l.b16 %v108
    %v838 = vunpack.c.h.b16 %v108
    %v839 = vunpack.c.l.b16 %v109
    %v840 = vunpack.c.l.b16 %v110
    %v841 = vunpack.c.h.b16 %v110
    %v842 = vunpack.c.l.b16 %v111
    %v843 = vunpack.c.l.b16 %v112
    %v844 = vunpack.c.h.b16 %v112
    %v845 = vunpack.c.l.b16 %v113
    %v846 = vunpack.c.l.b16 %v114
    %v847 = vunpack.c.h.b16 %v114
    %v848 = vunpack.c.l.b16 %v115
    %v849 = vunpack.c.l.b16 %v116
    %v850 = vunpack.c.h.b16 %v116
    %v851 = vunpack.c.l.b16 %v117
    %v852 = vunpack.c.l.b16 %v118
    %v853 = vunpack.c.h.b16 %v118
    %v854 = vunpack.c.l.b16 %v119
    %v855 = vunpack.c.l.b16 %v120
    %v856 = vunpack.c.h.b16 %v120
    %v857 = vunpack.c.l.b16 %v121
    %v858 = vunpack.c.l.b16 %v122
    %v859 = vunpack.c.h.b16 %v122
    %v860 = vunpack.c.l.b16 %v123
    %v861 = vunpack.c.l.b16 %v124
    %v862 = vunpack.c.h.b16 %v124
    %v863 = vunpack.c.l.b16 %v125
    %v864 = vunpack.c.l.b16 %v126
    %v865 = vunpack.c.h.b16 %v126
    %v866 = vunpack.c.l.b16 %v127
    %v867 = vunpack.c.l.b16 %v128
    %v868 = vunpack.c.h.b16 %v128
    %v869 = vunpack.c.l.b16 %v129
    %v870 = vunpack.c.l.b16 %v130
    %v871 = vunpack.c.h.b16 %v130
    %v872 = vunpack.c.l.b16 %v131
    %v873 = vunpack.c.l.b16 %v132
    %v874 = vunpack.c.h.b16 %v132
    %v875 = vunpack.c.l.b16 %v133
    %v876 = vpack.c.b16 %v735, %v732
    %v877 = vpack.c.b16 %v736, %v733
    %v878 = vpack.c.b16 %v737, %v734
    %v879 = vpack.c.b16 %v741, %v738
    %v880 = vpack.c.b16 %v742, %v739
    %v881 = vpack.c.b16 %v743, %v740
    %v882 = vpack.c.b16 %v747, %v744
    %v883 = vpack.c.b16 %v748, %v745
    %v884 = vpack.c.b16 %v749, %v746
    %v885 = vpack.c.b16 %v753, %v750
    %v886 = vpack.c.b16 %v754, %v751
    %v887 = vpack.c.b16 %v755, %v752
    %v888 = vpack.c.b16 %v759, %v756
    %v889 = vpack.c.b16 %v760, %v757
    %v890 = vpack.c.b16 %v761, %v758
    %v891 = vpack.c.b16 %v765, %v762
    %v892 = vpack.c.b16 %v766, %v763
    %v893 = vpack.c.b16 %v767, %v764
    %v894 = vpack.c.b16 %v771, %v768
    %v895 = vpack.c.b16 %v772, %v769
    %v896 = vpack.c.b16 %v773, %v770
    %v897 = vpack.c.b16 %v777, %v774
    %v898 = vpack.c.b16 %v778, %v775
    %v899 = vpack.c.b16 %v779, %v776
    %v900 = vpack.c.b16 %v783, %v780
    %v901 = vpack.c.b16 %v784, %v781
    %v902 = vpack.c.b16 %v785, %v782
    %v903 = vpack.c.b16 %v789, %v786
    %v904 = vpack.c.b16 %v790, %v787
    %v905 = vpack.c.b16 %v791, %v788
    %v906 = vpack.c.b16 %v795, %v792
    %v907 = vpack.c.b16 %v796, %v793
    %v908 = vpack.c.b16 %v797, %v794
    %v909 = vpack.c.b16 %v801, %v798
    %v910 = vpack.c.b16 %v802, %v799
    %v911 = vpack.c.b16 %v803, %v800
    %v912 = vpack.c.b16 %v807, %v804
    %v913 = vpack.c.b16 %v808, %v805
    %v914 = vpack.c.b16 %v809, %v806
    %v915 = vpack.c.b16 %v813, %v810
    %v916 = vpack.c.b16 %v814, %v811
    %v917 = vpack.c.b16 %v815, %v812
    %v918 = vpack.c.b16 %v819, %v816
    %v919 = vpack.c.b16 %v820, %v817
    %v920 = vpack.c.b16 %v821, %v818
    %v921 = vpack.c.b16 %v825, %v822
    %v922 = vpack.c.b16 %v826, %v823
    %v923 = vpack.c.b16 %v827, %v824
    %v924 = vpack.c.b16 %v831, %v828
    %v925 = vpack.c.b16 %v832, %v829
    %v926 = vpack.c.b16 %v833, %v830
    %v927 = vpack.c.b16 %v837, %v834
    %v928 = vpack.c.b16 %v838, %v835
    %v929 = vpack.c.b16 %v839, %v836
    %v930 = vpack.c.b16 %v843, %v840
    %v931 = vpack.c.b16 %v844, %v841
    %v932 = vpack.c.b16 %v845, %v842
    %v933 = vpack.c.b16 %v849, %v846
    %v934 = vpack.c.b16 %v850, %v847
    %v935 = vpack.c.b16 %v851, %v848
    %v936 = vpack.c.b16 %v855, %v852
    %v937 = vpack.c.b16 %v856, %v853
    %v938 = vpack.c.b16 %v857, %v854
    %v939 = vpack.c.b16 %v861, %v858
    %v940 = vpack.c.b16 %v862, %v859
    %v941 = vpack.c.b16 %v863, %v860
    %v942 = vpack.c.b16 %v867, %v864
    %v943 = vpack.c.b16 %v868, %v865
    %v944 = vpack.c.b16 %v869, %v866
    %v945 = vpack.c.b16 %v873, %v870
    %v946 = vpack.c.b16 %v874, %v871
    %v947 = vpack.c.b16 %v875, %v872
    %1020 = vmatprep.subr.bf16.mxu0 0
    %1021 = vmatpush1.bf16.msra.mxu0 %v612
    %1022 = vmatprep.subr.bf16.mxu0 0
    %1023 = vmatpush1.bf16.msra.mxu0 %v611
    %1024 = vmatprep.subr.bf16.mxu0 0
    %1025 = vmatpush1.bf16.msra.mxu0 %v610
    %1026 = vmatprep.subr.bf16.mxu0 0
    %1027 = vmatpush1.bf16.msra.mxu0 %v609
    %1028 = vmatprep.subr.bf16.mxu0 0
    %1029 = vmatpush1.bf16.msra.mxu0 %v608
    %1030 = vmatprep.subr.bf16.mxu0 0
    %1031 = vmatpush1.bf16.msra.mxu0 %v607
    %1032 = vmatprep.subr.bf16.mxu0 0
    %1033 = vmatpush1.bf16.msra.mxu0 %v606
    %1034 = vmatprep.subr.bf16.mxu0 0
    %1035 = vmatpush1.bf16.msra.mxu0 %v605
    %1036 = vmatprep.subr.bf16.mxu0 0
    %1037 = vmatpush2.bf16.msra.mxu0 %v620
    %1038 = vmatprep.subr.bf16.mxu0 0
    %1039 = vmatpush2.bf16.msra.mxu0 %v619
    %1040 = vmatprep.subr.bf16.mxu0 0
    %1041 = vmatpush2.bf16.msra.mxu0 %v618
    %1042 = vmatprep.subr.bf16.mxu0 0
    %1043 = vmatpush2.bf16.msra.mxu0 %v617
    %1044 = vmatprep.subr.bf16.mxu0 0
    %1045 = vmatpush2.bf16.msra.mxu0 %v616
    %1046 = vmatprep.subr.bf16.mxu0 0
    %1047 = vmatpush2.bf16.msra.mxu0 %v615
    %1048 = vmatprep.subr.bf16.mxu0 0
    %1049 = vmatpush2.bf16.msra.mxu0 %v614
    %1050 = vmatprep.subr.bf16.mxu0 0
    %1051 = vmatpush2.bf16.msra.mxu0 %v613
    %1052 = vmatprep.mubr.bf16.mxu0 %v877
    %1053 = vmatmul.mubr.bf16.gmra.mxu0 %v876
    %v1054 = vpop.f32.mrf.mxu0
    %v1055 = vadd.f32 %v634, %v1054
    %v1056 = vpop.f32.mrf.mxu0
    %v1057 = vpop.f32.mrf.mxu0
    %v1058 = vadd.f32 %v634, %v1057
    %v1059 = vpop.f32.mrf.mxu0
    %1060 = vmatprep.mubr.bf16.mxu0 %v880
    %1061 = vmatmul.mubr.bf16.gmra.mxu0 %v879
    %v1062 = vpop.f32.mrf.mxu0
    %v1063 = vadd.f32 %v634, %v1062
    %v1064 = vpop.f32.mrf.mxu0
    %v1065 = vpop.f32.mrf.mxu0
    %v1066 = vadd.f32 %v634, %v1065
    %v1067 = vpop.f32.mrf.mxu0
    %1068 = vmatprep.mubr.bf16.mxu0 %v883
    %1069 = vmatmul.mubr.bf16.gmra.mxu0 %v882
    %v1070 = vpop.f32.mrf.mxu0
    %v1071 = vadd.f32 %v634, %v1070
    %v1072 = vpop.f32.mrf.mxu0
    %v1073 = vpop.f32.mrf.mxu0
    %v1074 = vadd.f32 %v634, %v1073
    %v1075 = vpop.f32.mrf.mxu0
    %1076 = vmatprep.mubr.bf16.mxu0 %v886
    %1077 = vmatmul.mubr.bf16.gmra.mxu0 %v885
    %v1078 = vpop.f32.mrf.mxu0
    %v1079 = vadd.f32 %v634, %v1078
    %v1080 = vpop.f32.mrf.mxu0
    %v1081 = vpop.f32.mrf.mxu0
    %v1082 = vadd.f32 %v634, %v1081
    %v1083 = vpop.f32.mrf.mxu0
    %1084 = vmatprep.mubr.bf16.mxu0 %v889
    %1085 = vmatmul.mubr.bf16.gmra.mxu0 %v888
    %v1086 = vpop.f32.mrf.mxu0
    %v1087 = vadd.f32 %v634, %v1086
    %v1088 = vpop.f32.mrf.mxu0
    %v1089 = vpop.f32.mrf.mxu0
    %v1090 = vadd.f32 %v634, %v1089
    %v1091 = vpop.f32.mrf.mxu0
    %1092 = vmatprep.mubr.bf16.mxu0 %v892
    %1093 = vmatmul.mubr.bf16.gmra.mxu0 %v891
    %v1094 = vpop.f32.mrf.mxu0
    %v1095 = vadd.f32 %v634, %v1094
    %v1096 = vpop.f32.mrf.mxu0
    %v1097 = vpop.f32.mrf.mxu0
    %v1098 = vadd.f32 %v634, %v1097
    %v1099 = vpop.f32.mrf.mxu0
    %1100 = vmatprep.mubr.bf16.mxu0 %v895
    %1101 = vmatmul.mubr.bf16.gmra.mxu0 %v894
    %v1102 = vpop.f32.mrf.mxu0
    %v1103 = vadd.f32 %v634, %v1102
    %v1104 = vpop.f32.mrf.mxu0
    %v1105 = vpop.f32.mrf.mxu0
    %v1106 = vadd.f32 %v634, %v1105
    %v1107 = vpop.f32.mrf.mxu0
    %1108 = vmatprep.mubr.bf16.mxu0 %v898
    %1109 = vmatmul.mubr.bf16.gmra.mxu0 %v897
    %v1110 = vpop.f32.mrf.mxu0
    %v1111 = vadd.f32 %v634, %v1110
    %v1112 = vpop.f32.mrf.mxu0
    %v1113 = vpop.f32.mrf.mxu0
    %v1114 = vadd.f32 %v634, %v1113
    %v1115 = vpop.f32.mrf.mxu0
    %1116 = vmatprep.mubr.bf16.mxu0 %v901
    %1117 = vmatmul.mubr.bf16.gmra.mxu0 %v900
    %v1118 = vpop.f32.mrf.mxu0
    %v1119 = vadd.f32 %v634, %v1118
    %v1120 = vpop.f32.mrf.mxu0
    %v1121 = vpop.f32.mrf.mxu0
    %v1122 = vadd.f32 %v634, %v1121
    %v1123 = vpop.f32.mrf.mxu0
    %1124 = vmatprep.mubr.bf16.mxu0 %v904
    %1125 = vmatmul.mubr.bf16.gmra.mxu0 %v903
    %v1126 = vpop.f32.mrf.mxu0
    %v1127 = vadd.f32 %v634, %v1126
    %v1128 = vpop.f32.mrf.mxu0
    %v1129 = vpop.f32.mrf.mxu0
    %v1130 = vadd.f32 %v634, %v1129
    %v1131 = vpop.f32.mrf.mxu0
    %1132 = vmatprep.mubr.bf16.mxu0 %v907
    %1133 = vmatmul.mubr.bf16.gmra.mxu0 %v906
    %v1134 = vpop.f32.mrf.mxu0
    %v1135 = vadd.f32 %v634, %v1134
    %v1136 = vpop.f32.mrf.mxu0
    %v1137 = vpop.f32.mrf.mxu0
    %v1138 = vadd.f32 %v634, %v1137
    %v1139 = vpop.f32.mrf.mxu0
    %1140 = vmatprep.mubr.bf16.mxu0 %v910
    %1141 = vmatmul.mubr.bf16.gmra.mxu0 %v909
    %v1142 = vpop.f32.mrf.mxu0
    %v1143 = vadd.f32 %v634, %v1142
    %v1144 = vpop.f32.mrf.mxu0
    %v1145 = vpop.f32.mrf.mxu0
    %v1146 = vadd.f32 %v634, %v1145
    %v1147 = vpop.f32.mrf.mxu0
    %1148 = vmatprep.mubr.bf16.mxu0 %v913
    %1149 = vmatmul.mubr.bf16.gmra.mxu0 %v912
    %v1150 = vpop.f32.mrf.mxu0
    %v1151 = vadd.f32 %v634, %v1150
    %v1152 = vpop.f32.mrf.mxu0
    %v1153 = vpop.f32.mrf.mxu0
    %v1154 = vadd.f32 %v634, %v1153
    %v1155 = vpop.f32.mrf.mxu0
    %1156 = vmatprep.mubr.bf16.mxu0 %v916
    %1157 = vmatmul.mubr.bf16.gmra.mxu0 %v915
    %v1158 = vpop.f32.mrf.mxu0
    %v1159 = vadd.f32 %v634, %v1158
    %v1160 = vpop.f32.mrf.mxu0
    %v1161 = vpop.f32.mrf.mxu0
    %v1162 = vadd.f32 %v634, %v1161
    %v1163 = vpop.f32.mrf.mxu0
    %1164 = vmatprep.mubr.bf16.mxu0 %v919
    %1165 = vmatmul.mubr.bf16.gmra.mxu0 %v918
    %v1166 = vpop.f32.mrf.mxu0
    %v1167 = vadd.f32 %v634, %v1166
    %v1168 = vpop.f32.mrf.mxu0
    %v1169 = vpop.f32.mrf.mxu0
    %v1170 = vadd.f32 %v634, %v1169
    %v1171 = vpop.f32.mrf.mxu0
    %1172 = vmatprep.mubr.bf16.mxu0 %v922
    %1173 = vmatmul.mubr.bf16.gmra.mxu0 %v921
    %v1174 = vpop.f32.mrf.mxu0
    %v1175 = vadd.f32 %v634, %v1174
    %v1176 = vpop.f32.mrf.mxu0
    %v1177 = vpop.f32.mrf.mxu0
    %v1178 = vadd.f32 %v634, %v1177
    %v1179 = vpop.f32.mrf.mxu0
    %1180 = vmatprep.mubr.bf16.mxu0 %v925
    %1181 = vmatmul.mubr.bf16.gmra.mxu0 %v924
    %v1182 = vpop.f32.mrf.mxu0
    %v1183 = vadd.f32 %v634, %v1182
    %v1184 = vpop.f32.mrf.mxu0
    %v1185 = vpop.f32.mrf.mxu0
    %v1186 = vadd.f32 %v634, %v1185
    %v1187 = vpop.f32.mrf.mxu0
    %1188 = vmatprep.mubr.bf16.mxu0 %v928
    %1189 = vmatmul.mubr.bf16.gmra.mxu0 %v927
    %v1190 = vpop.f32.mrf.mxu0
    %v1191 = vadd.f32 %v634, %v1190
    %v1192 = vpop.f32.mrf.mxu0
    %v1193 = vpop.f32.mrf.mxu0
    %v1194 = vadd.f32 %v634, %v1193
    %v1195 = vpop.f32.mrf.mxu0
    %1196 = vmatprep.mubr.bf16.mxu0 %v931
    %1197 = vmatmul.mubr.bf16.gmra.mxu0 %v930
    %v1198 = vpop.f32.mrf.mxu0
    %v1199 = vadd.f32 %v634, %v1198
    %v1200 = vpop.f32.mrf.mxu0
    %v1201 = vpop.f32.mrf.mxu0
    %v1202 = vadd.f32 %v634, %v1201
    %v1203 = vpop.f32.mrf.mxu0
    %1204 = vmatprep.mubr.bf16.mxu0 %v934
    %1205 = vmatmul.mubr.bf16.gmra.mxu0 %v933
    %v1206 = vpop.f32.mrf.mxu0
    %v1207 = vadd.f32 %v634, %v1206
    %v1208 = vpop.f32.mrf.mxu0
    %v1209 = vpop.f32.mrf.mxu0
    %v1210 = vadd.f32 %v634, %v1209
    %v1211 = vpop.f32.mrf.mxu0
    %1212 = vmatprep.mubr.bf16.mxu0 %v937
    %1213 = vmatmul.mubr.bf16.gmra.mxu0 %v936
    %v1214 = vpop.f32.mrf.mxu0
    %v1215 = vadd.f32 %v634, %v1214
    %v1216 = vpop.f32.mrf.mxu0
    %v1217 = vpop.f32.mrf.mxu0
    %v1218 = vadd.f32 %v634, %v1217
    %v1219 = vpop.f32.mrf.mxu0
    %1220 = vmatprep.mubr.bf16.mxu0 %v940
    %1221 = vmatmul.mubr.bf16.gmra.mxu0 %v939
    %v1222 = vpop.f32.mrf.mxu0
    %v1223 = vadd.f32 %v634, %v1222
    %v1224 = vpop.f32.mrf.mxu0
    %v1225 = vpop.f32.mrf.mxu0
    %v1226 = vadd.f32 %v634, %v1225
    %v1227 = vpop.f32.mrf.mxu0
    %1228 = vmatprep.mubr.bf16.mxu0 %v943
    %1229 = vmatmul.mubr.bf16.gmra.mxu0 %v942
    %v1230 = vpop.f32.mrf.mxu0
    %v1231 = vadd.f32 %v634, %v1230
    %v1232 = vpop.f32.mrf.mxu0
    %v1233 = vpop.f32.mrf.mxu0
    %v1234 = vadd.f32 %v634, %v1233
    %v1235 = vpop.f32.mrf.mxu0
    %1236 = vmatprep.mubr.bf16.mxu0 %v946
    %1237 = vmatmul.mubr.bf16.gmra.mxu0 %v945
    %v1238 = vpop.f32.mrf.mxu0
    %v1239 = vadd.f32 %v634, %v1238
    %v1240 = vpop.f32.mrf.mxu0
    %v1241 = vpop.f32.mrf.mxu0
    %v1242 = vadd.f32 %v634, %v1241
    %v1243 = vpop.f32.mrf.mxu0
    %1244 = vdwg.mxu0
    %1245 = vmatprep.subr.bf16.mxu0 0
    %1246 = vmatpush1.bf16.msra.mxu0 %v628
    %1247 = vmatprep.subr.bf16.mxu0 0
    %1248 = vmatpush1.bf16.msra.mxu0 %v627
    %1249 = vmatprep.subr.bf16.mxu0 0
    %1250 = vmatpush1.bf16.msra.mxu0 %v626
    %1251 = vmatprep.subr.bf16.mxu0 0
    %1252 = vmatpush1.bf16.msra.mxu0 %v625
    %1253 = vmatprep.subr.bf16.mxu0 0
    %1254 = vmatpush1.bf16.msra.mxu0 %v624
    %1255 = vmatprep.subr.bf16.mxu0 0
    %1256 = vmatpush1.bf16.msra.mxu0 %v623
    %1257 = vmatprep.subr.bf16.mxu0 0
    %1258 = vmatpush1.bf16.msra.mxu0 %v622
    %1259 = vmatprep.subr.bf16.mxu0 0
    %1260 = vmatpush1.bf16.msra.mxu0 %v621
    %1261 = vmatprep.subr.bf16.mxu0 0
    %1262 = vmatpush2.bf16.msra.mxu0 0
    %1263 = vmatprep.subr.bf16.mxu0 0
    %1264 = vmatpush2.bf16.msra.mxu0 0
    %1265 = vmatprep.subr.bf16.mxu0 0
    %1266 = vmatpush2.bf16.msra.mxu0 0
    %1267 = vmatprep.subr.bf16.mxu0 0
    %1268 = vmatpush2.bf16.msra.mxu0 0
    %1269 = vmatprep.subr.bf16.mxu0 0
    %1270 = vmatpush2.bf16.msra.mxu0 0
    %1271 = vmatprep.subr.bf16.mxu0 0
    %1272 = vmatpush2.bf16.msra.mxu0 0
    %1273 = vmatprep.subr.bf16.mxu0 0
    %1274 = vmatpush2.bf16.msra.mxu0 0
    %1275 = vmatprep.subr.bf16.mxu0 0
    %1276 = vmatpush2.bf16.msra.mxu0 0
    %1277 = vmatprep.mubr.bf16.mxu0 0
    %1278 = vmatmul.mubr.bf16.gmra.mxu0 %v878
    %v1279 = vpop.f32.mrf.mxu0
    %v1280 = vadd.f32 %v1055, %v1279
    %v1281 = vpop.f32.mrf.mxu0
    %v1282 = vpop.f32.mrf.mxu0
    %v1283 = vadd.f32 %v1058, %v1282
    %v1284 = vpop.f32.mrf.mxu0
    %1285 = vmatprep.mubr.bf16.mxu0 0
    %1286 = vmatmul.mubr.bf16.gmra.mxu0 %v881
    %v1287 = vpop.f32.mrf.mxu0
    %v1288 = vadd.f32 %v1063, %v1287
    %v1289 = vpop.f32.mrf.mxu0
    %v1290 = vpop.f32.mrf.mxu0
    %v1291 = vadd.f32 %v1066, %v1290
    %v1292 = vpop.f32.mrf.mxu0
    %1293 = vmatprep.mubr.bf16.mxu0 0
    %1294 = vmatmul.mubr.bf16.gmra.mxu0 %v884
    %v1295 = vpop.f32.mrf.mxu0
    %v1296 = vadd.f32 %v1071, %v1295
    %v1297 = vpop.f32.mrf.mxu0
    %v1298 = vpop.f32.mrf.mxu0
    %v1299 = vadd.f32 %v1074, %v1298
    %v1300 = vpop.f32.mrf.mxu0
    %1301 = vmatprep.mubr.bf16.mxu0 0
    %1302 = vmatmul.mubr.bf16.gmra.mxu0 %v887
    %v1303 = vpop.f32.mrf.mxu0
    %v1304 = vadd.f32 %v1079, %v1303
    %v1305 = vpop.f32.mrf.mxu0
    %v1306 = vpop.f32.mrf.mxu0
    %v1307 = vadd.f32 %v1082, %v1306
    %v1308 = vpop.f32.mrf.mxu0
    %1309 = vmatprep.mubr.bf16.mxu0 0
    %1310 = vmatmul.mubr.bf16.gmra.mxu0 %v890
    %v1311 = vpop.f32.mrf.mxu0
    %v1312 = vadd.f32 %v1087, %v1311
    %v1313 = vpop.f32.mrf.mxu0
    %v1314 = vpop.f32.mrf.mxu0
    %v1315 = vadd.f32 %v1090, %v1314
    %v1316 = vpop.f32.mrf.mxu0
    %1317 = vmatprep.mubr.bf16.mxu0 0
    %1318 = vmatmul.mubr.bf16.gmra.mxu0 %v893
    %v1319 = vpop.f32.mrf.mxu0
    %v1320 = vadd.f32 %v1095, %v1319
    %v1321 = vpop.f32.mrf.mxu0
    %v1322 = vpop.f32.mrf.mxu0
    %v1323 = vadd.f32 %v1098, %v1322
    %v1324 = vpop.f32.mrf.mxu0
    %1325 = vmatprep.mubr.bf16.mxu0 0
    %1326 = vmatmul.mubr.bf16.gmra.mxu0 %v896
    %v1327 = vpop.f32.mrf.mxu0
    %v1328 = vadd.f32 %v1103, %v1327
    %v1329 = vpop.f32.mrf.mxu0
    %v1330 = vpop.f32.mrf.mxu0
    %v1331 = vadd.f32 %v1106, %v1330
    %v1332 = vpop.f32.mrf.mxu0
    %1333 = vmatprep.mubr.bf16.mxu0 0
    %1334 = vmatmul.mubr.bf16.gmra.mxu0 %v899
    %v1335 = vpop.f32.mrf.mxu0
    %v1336 = vadd.f32 %v1111, %v1335
    %v1337 = vpop.f32.mrf.mxu0
    %v1338 = vpop.f32.mrf.mxu0
    %v1339 = vadd.f32 %v1114, %v1338
    %v1340 = vpop.f32.mrf.mxu0
    %1341 = vmatprep.mubr.bf16.mxu0 0
    %1342 = vmatmul.mubr.bf16.gmra.mxu0 %v902
    %v1343 = vpop.f32.mrf.mxu0
    %v1344 = vadd.f32 %v1119, %v1343
    %v1345 = vpop.f32.mrf.mxu0
    %v1346 = vpop.f32.mrf.mxu0
    %v1347 = vadd.f32 %v1122, %v1346
    %v1348 = vpop.f32.mrf.mxu0
    %1349 = vmatprep.mubr.bf16.mxu0 0
    %1350 = vmatmul.mubr.bf16.gmra.mxu0 %v905
    %v1351 = vpop.f32.mrf.mxu0
    %v1352 = vadd.f32 %v1127, %v1351
    %v1353 = vpop.f32.mrf.mxu0
    %v1354 = vpop.f32.mrf.mxu0
    %v1355 = vadd.f32 %v1130, %v1354
    %v1356 = vpop.f32.mrf.mxu0
    %1357 = vmatprep.mubr.bf16.mxu0 0
    %1358 = vmatmul.mubr.bf16.gmra.mxu0 %v908
    %v1359 = vpop.f32.mrf.mxu0
    %v1360 = vadd.f32 %v1135, %v1359
    %v1361 = vpop.f32.mrf.mxu0
    %v1362 = vpop.f32.mrf.mxu0
    %v1363 = vadd.f32 %v1138, %v1362
    %v1364 = vpop.f32.mrf.mxu0
    %1365 = vmatprep.mubr.bf16.mxu0 0
    %1366 = vmatmul.mubr.bf16.gmra.mxu0 %v911
    %v1367 = vpop.f32.mrf.mxu0
    %v1368 = vadd.f32 %v1143, %v1367
    %v1369 = vpop.f32.mrf.mxu0
    %v1370 = vpop.f32.mrf.mxu0
    %v1371 = vadd.f32 %v1146, %v1370
    %v1372 = vpop.f32.mrf.mxu0
    %1373 = vmatprep.mubr.bf16.mxu0 0
    %1374 = vmatmul.mubr.bf16.gmra.mxu0 %v914
    %v1375 = vpop.f32.mrf.mxu0
    %v1376 = vadd.f32 %v1151, %v1375
    %v1377 = vpop.f32.mrf.mxu0
    %v1378 = vpop.f32.mrf.mxu0
    %v1379 = vadd.f32 %v1154, %v1378
    %v1380 = vpop.f32.mrf.mxu0
    %1381 = vmatprep.mubr.bf16.mxu0 0
    %1382 = vmatmul.mubr.bf16.gmra.mxu0 %v917
    %v1383 = vpop.f32.mrf.mxu0
    %v1384 = vadd.f32 %v1159, %v1383
    %v1385 = vpop.f32.mrf.mxu0
    %v1386 = vpop.f32.mrf.mxu0
    %v1387 = vadd.f32 %v1162, %v1386
    %v1388 = vpop.f32.mrf.mxu0
    %1389 = vmatprep.mubr.bf16.mxu0 0
    %1390 = vmatmul.mubr.bf16.gmra.mxu0 %v920
    %v1391 = vpop.f32.mrf.mxu0
    %v1392 = vadd.f32 %v1167, %v1391
    %v1393 = vpop.f32.mrf.mxu0
    %v1394 = vpop.f32.mrf.mxu0
    %v1395 = vadd.f32 %v1170, %v1394
    %v1396 = vpop.f32.mrf.mxu0
    %1397 = vmatprep.mubr.bf16.mxu0 0
    %1398 = vmatmul.mubr.bf16.gmra.mxu0 %v923
    %v1399 = vpop.f32.mrf.mxu0
    %v1400 = vadd.f32 %v1175, %v1399
    %v1401 = vpop.f32.mrf.mxu0
    %v1402 = vpop.f32.mrf.mxu0
    %v1403 = vadd.f32 %v1178, %v1402
    %v1404 = vpop.f32.mrf.mxu0
    %1405 = vmatprep.mubr.bf16.mxu0 0
    %1406 = vmatmul.mubr.bf16.gmra.mxu0 %v926
    %v1407 = vpop.f32.mrf.mxu0
    %v1408 = vadd.f32 %v1183, %v1407
    %v1409 = vpop.f32.mrf.mxu0
    %v1410 = vpop.f32.mrf.mxu0
    %v1411 = vadd.f32 %v1186, %v1410
    %v1412 = vpop.f32.mrf.mxu0
    %1413 = vmatprep.mubr.bf16.mxu0 0
    %1414 = vmatmul.mubr.bf16.gmra.mxu0 %v929
    %v1415 = vpop.f32.mrf.mxu0
    %v1416 = vadd.f32 %v1191, %v1415
    %v1417 = vpop.f32.mrf.mxu0
    %v1418 = vpop.f32.mrf.mxu0
    %v1419 = vadd.f32 %v1194, %v1418
    %v1420 = vpop.f32.mrf.mxu0
    %1421 = vmatprep.mubr.bf16.mxu0 0
    %1422 = vmatmul.mubr.bf16.gmra.mxu0 %v932
    %v1423 = vpop.f32.mrf.mxu0
    %v1424 = vadd.f32 %v1199, %v1423
    %v1425 = vpop.f32.mrf.mxu0
    %v1426 = vpop.f32.mrf.mxu0
    %v1427 = vadd.f32 %v1202, %v1426
    %v1428 = vpop.f32.mrf.mxu0
    %1429 = vmatprep.mubr.bf16.mxu0 0
    %1430 = vmatmul.mubr.bf16.gmra.mxu0 %v935
    %v1431 = vpop.f32.mrf.mxu0
    %v1432 = vadd.f32 %v1207, %v1431
    %v1433 = vpop.f32.mrf.mxu0
    %v1434 = vpop.f32.mrf.mxu0
    %v1435 = vadd.f32 %v1210, %v1434
    %v1436 = vpop.f32.mrf.mxu0
    %1437 = vmatprep.mubr.bf16.mxu0 0
    %1438 = vmatmul.mubr.bf16.gmra.mxu0 %v938
    %v1439 = vpop.f32.mrf.mxu0
    %v1440 = vadd.f32 %v1215, %v1439
    %v1441 = vpop.f32.mrf.mxu0
    %v1442 = vpop.f32.mrf.mxu0
    %v1443 = vadd.f32 %v1218, %v1442
    %v1444 = vpop.f32.mrf.mxu0
    %1445 = vmatprep.mubr.bf16.mxu0 0
    %1446 = vmatmul.mubr.bf16.gmra.mxu0 %v941
    %v1447 = vpop.f32.mrf.mxu0
    %v1448 = vadd.f32 %v1223, %v1447
    %v1449 = vpop.f32.mrf.mxu0
    %v1450 = vpop.f32.mrf.mxu0
    %v1451 = vadd.f32 %v1226, %v1450
    %v1452 = vpop.f32.mrf.mxu0
    %1453 = vmatprep.mubr.bf16.mxu0 0
    %1454 = vmatmul.mubr.bf16.gmra.mxu0 %v944
    %v1455 = vpop.f32.mrf.mxu0
    %v1456 = vadd.f32 %v1231, %v1455
    %v1457 = vpop.f32.mrf.mxu0
    %v1458 = vpop.f32.mrf.mxu0
    %v1459 = vadd.f32 %v1234, %v1458
    %v1460 = vpop.f32.mrf.mxu0
    %1461 = vmatprep.mubr.bf16.mxu0 0
    %1462 = vmatmul.mubr.bf16.gmra.mxu0 %v947
    %v1463 = vpop.f32.mrf.mxu0
    %v1464 = vadd.f32 %v1239, %v1463
    %v1465 = vpop.f32.mrf.mxu0
    %v1466 = vpop.f32.mrf.mxu0
    %v1467 = vadd.f32 %v1242, %v1466
    %v1468 = vpop.f32.mrf.mxu0
    %1469 = vdwg.mxu0
    %v1470 = vmax.f32 %v1280, 0.0
    %v1471 = vmax.f32 %v1283, 0.0
    %v1472 = vmax.f32 %v1288, 0.0
    %v1473 = vmax.f32 %v1291, 0.0
    %v1474 = vmax.f32 %v1296, 0.0
    %v1475 = vmax.f32 %v1299, 0.0
    %v1476 = vmax.f32 %v1304, 0.0
    %v1477 = vmax.f32 %v1307, 0.0
    %v1478 = vmax.f32 %v1312, 0.0
    %v1479 = vmax.f32 %v1315, 0.0
    %v1480 = vmax.f32 %v1320, 0.0
    %v1481 = vmax.f32 %v1323, 0.0
    %v1482 = vmax.f32 %v1328, 0.0
    %v1483 = vmax.f32 %v1331, 0.0
    %v1484 = vmax.f32 %v1336, 0.0
    %v1485 = vmax.f32 %v1339, 0.0
    %v1486 = vmax.f32 %v1344, 0.0
    %v1487 = vmax.f32 %v1347, 0.0
    %v1488 = vmax.f32 %v1352, 0.0
    %v1489 = vmax.f32 %v1355, 0.0
    %v1490 = vmax.f32 %v1360, 0.0
    %v1491 = vmax.f32 %v1363, 0.0
    %v1492 = vmax.f32 %v1368, 0.0
    %v1493 = vmax.f32 %v1371, 0.0
    %v1494 = vmax.f32 %v1376, 0.0
    %v1495 = vmax.f32 %v1379, 0.0
    %v1496 = vmax.f32 %v1384, 0.0
    %v1497 = vmax.f32 %v1387, 0.0
    %v1498 = vmax.f32 %v1392, 0.0
    %v1499 = vmax.f32 %v1395, 0.0
    %v1500 = vmax.f32 %v1400, 0.0
    %v1501 = vmax.f32 %v1403, 0.0
    %v1502 = vmax.f32 %v1408, 0.0
    %v1503 = vmax.f32 %v1411, 0.0
    %v1504 = vmax.f32 %v1416, 0.0
    %v1505 = vmax.f32 %v1419, 0.0
    %v1506 = vmax.f32 %v1424, 0.0
    %v1507 = vmax.f32 %v1427, 0.0
    %v1508 = vmax.f32 %v1432, 0.0
    %v1509 = vmax.f32 %v1435, 0.0
    %v1510 = vmax.f32 %v1440, 0.0
    %v1511 = vmax.f32 %v1443, 0.0
    %v1512 = vmax.f32 %v1448, 0.0
    %v1513 = vmax.f32 %v1451, 0.0
    %v1514 = vmax.f32 %v1456, 0.0
    %v1515 = vmax.f32 %v1459, 0.0
    %v1516 = vmax.f32 %v1464, 0.0
    %v1517 = vmax.f32 %v1467, 0.0
    %v1518 = vpack.c.bf16 %v1471, %v1470
    %v1519 = vpack.c.bf16 %v1473, %v1472
    %v1520 = vpack.c.bf16 %v1475, %v1474
    %v1521 = vpack.c.bf16 %v1477, %v1476
    %v1522 = vpack.c.bf16 %v1479, %v1478
    %v1523 = vpack.c.bf16 %v1481, %v1480
    %v1524 = vpack.c.bf16 %v1483, %v1482
    %v1525 = vpack.c.bf16 %v1485, %v1484
    %v1526 = vpack.c.bf16 %v1487, %v1486
    %v1527 = vpack.c.bf16 %v1489, %v1488
    %v1528 = vpack.c.bf16 %v1491, %v1490
    %v1529 = vpack.c.bf16 %v1493, %v1492
    %v1530 = vpack.c.bf16 %v1495, %v1494
    %v1531 = vpack.c.bf16 %v1497, %v1496
    %v1532 = vpack.c.bf16 %v1499, %v1498
    %v1533 = vpack.c.bf16 %v1501, %v1500
    %v1534 = vpack.c.bf16 %v1503, %v1502
    %v1535 = vpack.c.bf16 %v1505, %v1504
    %v1536 = vpack.c.bf16 %v1507, %v1506
    %v1537 = vpack.c.bf16 %v1509, %v1508
    %v1538 = vpack.c.bf16 %v1511, %v1510
    %v1539 = vpack.c.bf16 %v1513, %v1512
    %v1540 = vpack.c.bf16 %v1515, %v1514
    %v1541 = vpack.c.bf16 %v1517, %v1516
    %v1542 = vld [vmem:[%s4] sm:$0xf]
    %v1543 = vld [vmem:[%s4 + $0x4] sm:$0xf]
    %v1544 = vld [vmem:[%s4 + $0x8] sm:$0xf]
    %v1545 = vld [vmem:[%s4 + $0xc] sm:$0xf]
    %v1546 = vld [vmem:[%s4 + $0x10] sm:$0xf]
    %v1547 = vld [vmem:[%s4 + $0x14] sm:$0xf]
    %v1548 = vld [vmem:[%s4 + $0x18] sm:$0xf]
    %v1549 = vld [vmem:[%s4 + $0x1c] sm:$0xf]
    %v1550 = vld [vmem:[%s4 + $0x20] sm:$0xf]
    %v1551 = vld [vmem:[%s4 + $0x24] sm:$0xf]
    %v1552 = vld [vmem:[%s4 + $0x28] sm:$0xf]
    %v1553 = vld [vmem:[%s4 + $0x2c] sm:$0xf]
    %v1554 = vld [vmem:[%s4 + $0x30] sm:$0xf]
    %v1555 = vld [vmem:[%s4 + $0x34] sm:$0xf]
    %v1556 = vld [vmem:[%s4 + $0x38] sm:$0xf]
    %v1557 = vld [vmem:[%s4 + $0x3c] sm:$0xf]
    %v1574 = vunpack.c.l.b16 %v1542
    %v1575 = vunpack.c.l.b16 %v1543
    %v1576 = vunpack.c.l.b16 %v1544
    %v1577 = vunpack.c.l.b16 %v1545
    %v1578 = vunpack.c.l.b16 %v1546
    %v1579 = vunpack.c.l.b16 %v1547
    %v1580 = vunpack.c.l.b16 %v1548
    %v1581 = vunpack.c.l.b16 %v1549
    %v1582 = vunpack.c.l.b16 %v1550
    %v1583 = vunpack.c.l.b16 %v1551
    %v1584 = vunpack.c.l.b16 %v1552
    %v1585 = vunpack.c.l.b16 %v1553
    %v1586 = vunpack.c.l.b16 %v1554
    %v1587 = vunpack.c.l.b16 %v1555
    %v1588 = vunpack.c.l.b16 %v1556
    %v1589 = vunpack.c.l.b16 %v1557
    %v1590 = vpack.c.b16 %v1575, %v1574
    %v1591 = vpack.c.b16 %v1577, %v1576
    %v1592 = vpack.c.b16 %v1579, %v1578
    %v1593 = vpack.c.b16 %v1581, %v1580
    %v1594 = vpack.c.b16 %v1583, %v1582
    %v1595 = vpack.c.b16 %v1585, %v1584
    %v1596 = vpack.c.b16 %v1587, %v1586
    %v1597 = vpack.c.b16 %v1589, %v1588
    %1606 = vmatprep.subr.bf16.mxu0 0
    %1607 = vmatpush1.bf16.msra.mxu0 %v1597
    %1608 = vmatprep.subr.bf16.mxu0 0
    %1609 = vmatpush1.bf16.msra.mxu0 %v1596
    %1610 = vmatprep.subr.bf16.mxu0 0
    %1611 = vmatpush1.bf16.msra.mxu0 %v1595
    %1612 = vmatprep.subr.bf16.mxu0 0
    %1613 = vmatpush1.bf16.msra.mxu0 %v1594
    %1614 = vmatprep.subr.bf16.mxu0 0
    %1615 = vmatpush1.bf16.msra.mxu0 %v1593
    %1616 = vmatprep.subr.bf16.mxu0 0
    %1617 = vmatpush1.bf16.msra.mxu0 %v1592
    %1618 = vmatprep.subr.bf16.mxu0 0
    %1619 = vmatpush1.bf16.msra.mxu0 %v1591
    %1620 = vmatprep.subr.bf16.mxu0 0
    %1621 = vmatpush1.bf16.msra.mxu0 %v1590
    %1622 = vmatprep.subr.bf16.mxu0 0
    %1623 = vmatpush2.bf16.msra.mxu0 0
    %1624 = vmatprep.subr.bf16.mxu0 0
    %1625 = vmatpush2.bf16.msra.mxu0 0
    %1626 = vmatprep.subr.bf16.mxu0 0
    %1627 = vmatpush2.bf16.msra.mxu0 0
    %1628 = vmatprep.subr.bf16.mxu0 0
    %1629 = vmatpush2.bf16.msra.mxu0 0
    %1630 = vmatprep.subr.bf16.mxu0 0
    %1631 = vmatpush2.bf16.msra.mxu0 0
    %1632 = vmatprep.subr.bf16.mxu0 0
    %1633 = vmatpush2.bf16.msra.mxu0 0
    %1634 = vmatprep.subr.bf16.mxu0 0
    %1635 = vmatpush2.bf16.msra.mxu0 0
    %1636 = vmatprep.subr.bf16.mxu0 0
    %1637 = vmatpush2.bf16.msra.mxu0 0
    %1638 = vmatprep.mubr.bf16.mxu0 0
    %1639 = vmatmul.mubr.bf16.gmra.mxu0 %v1518
    %v1640 = vpop.f32.mrf.mxu0
    %v1641 = vadd.f32 0.0, %v1640
    %v1642 = vpop.f32.mrf.mxu0
    %v1643 = vpop.f32.mrf.mxu0
    %v1644 = vadd.f32 0.0, %v1643
    %v1645 = vpop.f32.mrf.mxu0
    %1646 = vmatprep.mubr.bf16.mxu0 0
    %1647 = vmatmul.mubr.bf16.gmra.mxu0 %v1519
    %v1648 = vpop.f32.mrf.mxu0
    %v1649 = vadd.f32 0.0, %v1648
    %v1650 = vpop.f32.mrf.mxu0
    %v1651 = vpop.f32.mrf.mxu0
    %v1652 = vadd.f32 0.0, %v1651
    %v1653 = vpop.f32.mrf.mxu0
    %1654 = vmatprep.mubr.bf16.mxu0 0
    %1655 = vmatmul.mubr.bf16.gmra.mxu0 %v1520
    %v1656 = vpop.f32.mrf.mxu0
    %v1657 = vadd.f32 0.0, %v1656
    %v1658 = vpop.f32.mrf.mxu0
    %v1659 = vpop.f32.mrf.mxu0
    %v1660 = vadd.f32 0.0, %v1659
    %v1661 = vpop.f32.mrf.mxu0
    %1662 = vmatprep.mubr.bf16.mxu0 0
    %1663 = vmatmul.mubr.bf16.gmra.mxu0 %v1521
    %v1664 = vpop.f32.mrf.mxu0
    %v1665 = vadd.f32 0.0, %v1664
    %v1666 = vpop.f32.mrf.mxu0
    %v1667 = vpop.f32.mrf.mxu0
    %v1668 = vadd.f32 0.0, %v1667
    %v1669 = vpop.f32.mrf.mxu0
    %1670 = vmatprep.mubr.bf16.mxu0 0
    %1671 = vmatmul.mubr.bf16.gmra.mxu0 %v1522
    %v1672 = vpop.f32.mrf.mxu0
    %v1673 = vadd.f32 0.0, %v1672
    %v1674 = vpop.f32.mrf.mxu0
    %v1675 = vpop.f32.mrf.mxu0
    %v1676 = vadd.f32 0.0, %v1675
    %v1677 = vpop.f32.mrf.mxu0
    %1678 = vmatprep.mubr.bf16.mxu0 0
    %1679 = vmatmul.mubr.bf16.gmra.mxu0 %v1523
    %v1680 = vpop.f32.mrf.mxu0
    %v1681 = vadd.f32 0.0, %v1680
    %v1682 = vpop.f32.mrf.mxu0
    %v1683 = vpop.f32.mrf.mxu0
    %v1684 = vadd.f32 0.0, %v1683
    %v1685 = vpop.f32.mrf.mxu0
    %1686 = vmatprep.mubr.bf16.mxu0 0
    %1687 = vmatmul.mubr.bf16.gmra.mxu0 %v1524
    %v1688 = vpop.f32.mrf.mxu0
    %v1689 = vadd.f32 0.0, %v1688
    %v1690 = vpop.f32.mrf.mxu0
    %v1691 = vpop.f32.mrf.mxu0
    %v1692 = vadd.f32 0.0, %v1691
    %v1693 = vpop.f32.mrf.mxu0
    %1694 = vmatprep.mubr.bf16.mxu0 0
    %1695 = vmatmul.mubr.bf16.gmra.mxu0 %v1525
    %v1696 = vpop.f32.mrf.mxu0
    %v1697 = vadd.f32 0.0, %v1696
    %v1698 = vpop.f32.mrf.mxu0
    %v1699 = vpop.f32.mrf.mxu0
    %v1700 = vadd.f32 0.0, %v1699
    %v1701 = vpop.f32.mrf.mxu0
    %1702 = vmatprep.mubr.bf16.mxu0 0
    %1703 = vmatmul.mubr.bf16.gmra.mxu0 %v1526
    %v1704 = vpop.f32.mrf.mxu0
    %v1705 = vadd.f32 0.0, %v1704
    %v1706 = vpop.f32.mrf.mxu0
    %v1707 = vpop.f32.mrf.mxu0
    %v1708 = vadd.f32 0.0, %v1707
    %v1709 = vpop.f32.mrf.mxu0
    %1710 = vmatprep.mubr.bf16.mxu0 0
    %1711 = vmatmul.mubr.bf16.gmra.mxu0 %v1527
    %v1712 = vpop.f32.mrf.mxu0
    %v1713 = vadd.f32 0.0, %v1712
    %v1714 = vpop.f32.mrf.mxu0
    %v1715 = vpop.f32.mrf.mxu0
    %v1716 = vadd.f32 0.0, %v1715
    %v1717 = vpop.f32.mrf.mxu0
    %1718 = vmatprep.mubr.bf16.mxu0 0
    %1719 = vmatmul.mubr.bf16.gmra.mxu0 %v1528
    %v1720 = vpop.f32.mrf.mxu0
    %v1721 = vadd.f32 0.0, %v1720
    %v1722 = vpop.f32.mrf.mxu0
    %v1723 = vpop.f32.mrf.mxu0
    %v1724 = vadd.f32 0.0, %v1723
    %v1725 = vpop.f32.mrf.mxu0
    %1726 = vmatprep.mubr.bf16.mxu0 0
    %1727 = vmatmul.mubr.bf16.gmra.mxu0 %v1529
    %v1728 = vpop.f32.mrf.mxu0
    %v1729 = vadd.f32 0.0, %v1728
    %v1730 = vpop.f32.mrf.mxu0
    %v1731 = vpop.f32.mrf.mxu0
    %v1732 = vadd.f32 0.0, %v1731
    %v1733 = vpop.f32.mrf.mxu0
    %1734 = vmatprep.mubr.bf16.mxu0 0
    %1735 = vmatmul.mubr.bf16.gmra.mxu0 %v1530
    %v1736 = vpop.f32.mrf.mxu0
    %v1737 = vadd.f32 0.0, %v1736
    %v1738 = vpop.f32.mrf.mxu0
    %v1739 = vpop.f32.mrf.mxu0
    %v1740 = vadd.f32 0.0, %v1739
    %v1741 = vpop.f32.mrf.mxu0
    %1742 = vmatprep.mubr.bf16.mxu0 0
    %1743 = vmatmul.mubr.bf16.gmra.mxu0 %v1531
    %v1744 = vpop.f32.mrf.mxu0
    %v1745 = vadd.f32 0.0, %v1744
    %v1746 = vpop.f32.mrf.mxu0
    %v1747 = vpop.f32.mrf.mxu0
    %v1748 = vadd.f32 0.0, %v1747
    %v1749 = vpop.f32.mrf.mxu0
    %1750 = vmatprep.mubr.bf16.mxu0 0
    %1751 = vmatmul.mubr.bf16.gmra.mxu0 %v1532
    %v1752 = vpop.f32.mrf.mxu0
    %v1753 = vadd.f32 0.0, %v1752
    %v1754 = vpop.f32.mrf.mxu0
    %v1755 = vpop.f32.mrf.mxu0
    %v1756 = vadd.f32 0.0, %v1755
    %v1757 = vpop.f32.mrf.mxu0
    %1758 = vmatprep.mubr.bf16.mxu0 0
    %1759 = vmatmul.mubr.bf16.gmra.mxu0 %v1533
    %v1760 = vpop.f32.mrf.mxu0
    %v1761 = vadd.f32 0.0, %v1760
    %v1762 = vpop.f32.mrf.mxu0
    %v1763 = vpop.f32.mrf.mxu0
    %v1764 = vadd.f32 0.0, %v1763
    %v1765 = vpop.f32.mrf.mxu0
    %1766 = vmatprep.mubr.bf16.mxu0 0
    %1767 = vmatmul.mubr.bf16.gmra.mxu0 %v1534
    %v1768 = vpop.f32.mrf.mxu0
    %v1769 = vadd.f32 0.0, %v1768
    %v1770 = vpop.f32.mrf.mxu0
    %v1771 = vpop.f32.mrf.mxu0
    %v1772 = vadd.f32 0.0, %v1771
    %v1773 = vpop.f32.mrf.mxu0
    %1774 = vmatprep.mubr.bf16.mxu0 0
    %1775 = vmatmul.mubr.bf16.gmra.mxu0 %v1535
    %v1776 = vpop.f32.mrf.mxu0
    %v1777 = vadd.f32 0.0, %v1776
    %v1778 = vpop.f32.mrf.mxu0
    %v1779 = vpop.f32.mrf.mxu0
    %v1780 = vadd.f32 0.0, %v1779
    %v1781 = vpop.f32.mrf.mxu0
    %1782 = vmatprep.mubr.bf16.mxu0 0
    %1783 = vmatmul.mubr.bf16.gmra.mxu0 %v1536
    %v1784 = vpop.f32.mrf.mxu0
    %v1785 = vadd.f32 0.0, %v1784
    %v1786 = vpop.f32.mrf.mxu0
    %v1787 = vpop.f32.mrf.mxu0
    %v1788 = vadd.f32 0.0, %v1787
    %v1789 = vpop.f32.mrf.mxu0
    %1790 = vmatprep.mubr.bf16.mxu0 0
    %1791 = vmatmul.mubr.bf16.gmra.mxu0 %v1537
    %v1792 = vpop.f32.mrf.mxu0
    %v1793 = vadd.f32 0.0, %v1792
    %v1794 = vpop.f32.mrf.mxu0
    %v1795 = vpop.f32.mrf.mxu0
    %v1796 = vadd.f32 0.0, %v1795
    %v1797 = vpop.f32.mrf.mxu0
    %1798 = vmatprep.mubr.bf16.mxu0 0
    %1799 = vmatmul.mubr.bf16.gmra.mxu0 %v1538
    %v1800 = vpop.f32.mrf.mxu0
    %v1801 = vadd.f32 0.0, %v1800
    %v1802 = vpop.f32.mrf.mxu0
    %v1803 = vpop.f32.mrf.mxu0
    %v1804 = vadd.f32 0.0, %v1803
    %v1805 = vpop.f32.mrf.mxu0
    %1806 = vmatprep.mubr.bf16.mxu0 0
    %1807 = vmatmul.mubr.bf16.gmra.mxu0 %v1539
    %v1808 = vpop.f32.mrf.mxu0
    %v1809 = vadd.f32 0.0, %v1808
    %v1810 = vpop.f32.mrf.mxu0
    %v1811 = vpop.f32.mrf.mxu0
    %v1812 = vadd.f32 0.0, %v1811
    %v1813 = vpop.f32.mrf.mxu0
    %1814 = vmatprep.mubr.bf16.mxu0 0
    %1815 = vmatmul.mubr.bf16.gmra.mxu0 %v1540
    %v1816 = vpop.f32.mrf.mxu0
    %v1817 = vadd.f32 0.0, %v1816
    %v1818 = vpop.f32.mrf.mxu0
    %v1819 = vpop.f32.mrf.mxu0
    %v1820 = vadd.f32 0.0, %v1819
    %v1821 = vpop.f32.mrf.mxu0
    %1822 = vmatprep.mubr.bf16.mxu0 0
    %1823 = vmatmul.mubr.bf16.gmra.mxu0 %v1541
    %v1824 = vpop.f32.mrf.mxu0
    %v1825 = vadd.f32 0.0, %v1824
    %v1826 = vpop.f32.mrf.mxu0
    %v1827 = vpop.f32.mrf.mxu0
    %v1828 = vadd.f32 0.0, %v1827
    %v1829 = vpop.f32.mrf.mxu0
    %1830 = vdwg.mxu0
    %v1831 = vpack.c.bf16 %v1644, %v1641
    %v1832 = vpack.c.bf16 %v1652, %v1649
    %v1833 = vpack.c.bf16 %v1660, %v1657
    %v1834 = vpack.c.bf16 %v1668, %v1665
    %v1835 = vpack.c.bf16 %v1676, %v1673
    %v1836 = vpack.c.bf16 %v1684, %v1681
    %v1837 = vpack.c.bf16 %v1692, %v1689
    %v1838 = vpack.c.bf16 %v1700, %v1697
    %v1839 = vpack.c.bf16 %v1708, %v1705
    %v1840 = vpack.c.bf16 %v1716, %v1713
    %v1841 = vpack.c.bf16 %v1724, %v1721
    %v1842 = vpack.c.bf16 %v1732, %v1729
    %v1843 = vpack.c.bf16 %v1740, %v1737
    %v1844 = vpack.c.bf16 %v1748, %v1745
    %v1845 = vpack.c.bf16 %v1756, %v1753
    %v1846 = vpack.c.bf16 %v1764, %v1761
    %v1847 = vpack.c.bf16 %v1772, %v1769
    %v1848 = vpack.c.bf16 %v1780, %v1777
    %v1849 = vpack.c.bf16 %v1788, %v1785
    %v1850 = vpack.c.bf16 %v1796, %v1793
    %v1851 = vpack.c.bf16 %v1804, %v1801
    %v1852 = vpack.c.bf16 %v1812, %v1809
    %v1853 = vpack.c.bf16 %v1820, %v1817
    %v1854 = vpack.c.bf16 %v1828, %v1825
    %v1855 = vld [vmem:[%s5] sm:$0x1]
    %v1857 = vlaneseq
    %v1858 = vshrl.u32 %v1857, 7
    %v1859 = vsub.s32 0, %v1858
    %v1860 = vrot.slane %v1855, %v1859
    %1862 = vmatprep.subr.bf16.mxu0 0
    %1863 = vmatpush1.bf16.msra.mxu0 %v1838
    %1864 = vmatprep.subr.bf16.mxu0 0
    %1865 = vmatpush1.bf16.msra.mxu0 %v1837
    %1866 = vmatprep.subr.bf16.mxu0 0
    %1867 = vmatpush1.bf16.msra.mxu0 %v1836
    %1868 = vmatprep.subr.bf16.mxu0 0
    %1869 = vmatpush1.bf16.msra.mxu0 %v1835
    %1870 = vmatprep.subr.bf16.mxu0 0
    %1871 = vmatpush1.bf16.msra.mxu0 %v1834
    %1872 = vmatprep.subr.bf16.mxu0 0
    %1873 = vmatpush1.bf16.msra.mxu0 %v1833
    %1874 = vmatprep.subr.bf16.mxu0 0
    %1875 = vmatpush1.bf16.msra.mxu0 %v1832
    %1876 = vmatprep.subr.bf16.mxu0 0
    %1877 = vmatpush1.bf16.msra.mxu0 %v1831
    %1878 = vmatprep.subr.bf16.mxu0 0
    %1879 = vmatpush2.bf16.msra.mxu0 %v1846
    %1880 = vmatprep.subr.bf16.mxu0 0
    %1881 = vmatpush2.bf16.msra.mxu0 %v1845
    %1882 = vmatprep.subr.bf16.mxu0 0
    %1883 = vmatpush2.bf16.msra.mxu0 %v1844
    %1884 = vmatprep.subr.bf16.mxu0 0
    %1885 = vmatpush2.bf16.msra.mxu0 %v1843
    %1886 = vmatprep.subr.bf16.mxu0 0
    %1887 = vmatpush2.bf16.msra.mxu0 %v1842
    %1888 = vmatprep.subr.bf16.mxu0 0
    %1889 = vmatpush2.bf16.msra.mxu0 %v1841
    %1890 = vmatprep.subr.bf16.mxu0 0
    %1891 = vmatpush2.bf16.msra.mxu0 %v1840
    %1892 = vmatprep.subr.bf16.mxu0 0
    %1893 = vmatpush2.bf16.msra.mxu0 %v1839
    %1894 = vmatprep.mubr.bf16.mxu0 %v877
    %1895 = vmatmul.mubr.bf16.gmra.mxu0 %v876
    %v1896 = vpop.f32.mrf.mxu0
    %v1897 = vadd.f32 %v1860, %v1896
    %v1898 = vpop.f32.mrf.mxu0
    %v1899 = vpop.f32.mrf.mxu0
    %v1900 = vadd.f32 %v1860, %v1899
    %v1901 = vpop.f32.mrf.mxu0
    %1902 = vmatprep.mubr.bf16.mxu0 %v880
    %1903 = vmatmul.mubr.bf16.gmra.mxu0 %v879
    %v1904 = vpop.f32.mrf.mxu0
    %v1905 = vadd.f32 %v1860, %v1904
    %v1906 = vpop.f32.mrf.mxu0
    %v1907 = vpop.f32.mrf.mxu0
    %v1908 = vadd.f32 %v1860, %v1907
    %v1909 = vpop.f32.mrf.mxu0
    %1910 = vmatprep.mubr.bf16.mxu0 %v883
    %1911 = vmatmul.mubr.bf16.gmra.mxu0 %v882
    %v1912 = vpop.f32.mrf.mxu0
    %v1913 = vadd.f32 %v1860, %v1912
    %v1914 = vpop.f32.mrf.mxu0
    %v1915 = vpop.f32.mrf.mxu0
    %v1916 = vadd.f32 %v1860, %v1915
    %v1917 = vpop.f32.mrf.mxu0
    %1918 = vmatprep.mubr.bf16.mxu0 %v886
    %1919 = vmatmul.mubr.bf16.gmra.mxu0 %v885
    %v1920 = vpop.f32.mrf.mxu0
    %v1921 = vadd.f32 %v1860, %v1920
    %v1922 = vpop.f32.mrf.mxu0
    %v1923 = vpop.f32.mrf.mxu0
    %v1924 = vadd.f32 %v1860, %v1923
    %v1925 = vpop.f32.mrf.mxu0
    %1926 = vmatprep.mubr.bf16.mxu0 %v889
    %1927 = vmatmul.mubr.bf16.gmra.mxu0 %v888
    %v1928 = vpop.f32.mrf.mxu0
    %v1929 = vadd.f32 %v1860, %v1928
    %v1930 = vpop.f32.mrf.mxu0
    %v1931 = vpop.f32.mrf.mxu0
    %v1932 = vadd.f32 %v1860, %v1931
    %v1933 = vpop.f32.mrf.mxu0
    %1934 = vmatprep.mubr.bf16.mxu0 %v892
    %1935 = vmatmul.mubr.bf16.gmra.mxu0 %v891
    %v1936 = vpop.f32.mrf.mxu0
    %v1937 = vadd.f32 %v1860, %v1936
    %v1938 = vpop.f32.mrf.mxu0
    %v1939 = vpop.f32.mrf.mxu0
    %v1940 = vadd.f32 %v1860, %v1939
    %v1941 = vpop.f32.mrf.mxu0
    %1942 = vmatprep.mubr.bf16.mxu0 %v895
    %1943 = vmatmul.mubr.bf16.gmra.mxu0 %v894
    %v1944 = vpop.f32.mrf.mxu0
    %v1945 = vadd.f32 %v1860, %v1944
    %v1946 = vpop.f32.mrf.mxu0
    %v1947 = vpop.f32.mrf.mxu0
    %v1948 = vadd.f32 %v1860, %v1947
    %v1949 = vpop.f32.mrf.mxu0
    %1950 = vmatprep.mubr.bf16.mxu0 %v898
    %1951 = vmatmul.mubr.bf16.gmra.mxu0 %v897
    %v1952 = vpop.f32.mrf.mxu0
    %v1953 = vadd.f32 %v1860, %v1952
    %v1954 = vpop.f32.mrf.mxu0
    %v1955 = vpop.f32.mrf.mxu0
    %v1956 = vadd.f32 %v1860, %v1955
    %v1957 = vpop.f32.mrf.mxu0
    %1958 = vmatprep.mubr.bf16.mxu0 %v901
    %1959 = vmatmul.mubr.bf16.gmra.mxu0 %v900
    %v1960 = vpop.f32.mrf.mxu0
    %v1961 = vadd.f32 %v1860, %v1960
    %v1962 = vpop.f32.mrf.mxu0
    %v1963 = vpop.f32.mrf.mxu0
    %v1964 = vadd.f32 %v1860, %v1963
    %v1965 = vpop.f32.mrf.mxu0
    %1966 = vmatprep.mubr.bf16.mxu0 %v904
    %1967 = vmatmul.mubr.bf16.gmra.mxu0 %v903
    %v1968 = vpop.f32.mrf.mxu0
    %v1969 = vadd.f32 %v1860, %v1968
    %v1970 = vpop.f32.mrf.mxu0
    %v1971 = vpop.f32.mrf.mxu0
    %v1972 = vadd.f32 %v1860, %v1971
    %v1973 = vpop.f32.mrf.mxu0
    %1974 = vmatprep.mubr.bf16.mxu0 %v907
    %1975 = vmatmul.mubr.bf16.gmra.mxu0 %v906
    %v1976 = vpop.f32.mrf.mxu0
    %v1977 = vadd.f32 %v1860, %v1976
    %v1978 = vpop.f32.mrf.mxu0
    %v1979 = vpop.f32.mrf.mxu0
    %v1980 = vadd.f32 %v1860, %v1979
    %v1981 = vpop.f32.mrf.mxu0
    %1982 = vmatprep.mubr.bf16.mxu0 %v910
    %1983 = vmatmul.mubr.bf16.gmra.mxu0 %v909
    %v1984 = vpop.f32.mrf.mxu0
    %v1985 = vadd.f32 %v1860, %v1984
    %v1986 = vpop.f32.mrf.mxu0
    %v1987 = vpop.f32.mrf.mxu0
    %v1988 = vadd.f32 %v1860, %v1987
    %v1989 = vpop.f32.mrf.mxu0
    %1990 = vmatprep.mubr.bf16.mxu0 %v913
    %1991 = vmatmul.mubr.bf16.gmra.mxu0 %v912
    %v1992 = vpop.f32.mrf.mxu0
    %v1993 = vadd.f32 %v1860, %v1992
    %v1994 = vpop.f32.mrf.mxu0
    %v1995 = vpop.f32.mrf.mxu0
    %v1996 = vadd.f32 %v1860, %v1995
    %v1997 = vpop.f32.mrf.mxu0
    %1998 = vmatprep.mubr.bf16.mxu0 %v916
    %1999 = vmatmul.mubr.bf16.gmra.mxu0 %v915
    %v2000 = vpop.f32.mrf.mxu0
    %v2001 = vadd.f32 %v1860, %v2000
    %v2002 = vpop.f32.mrf.mxu0
    %v2003 = vpop.f32.mrf.mxu0
    %v2004 = vadd.f32 %v1860, %v2003
    %v2005 = vpop.f32.mrf.mxu0
    %2006 = vmatprep.mubr.bf16.mxu0 %v919
    %2007 = vmatmul.mubr.bf16.gmra.mxu0 %v918
    %v2008 = vpop.f32.mrf.mxu0
    %v2009 = vadd.f32 %v1860, %v2008
    %v2010 = vpop.f32.mrf.mxu0
    %v2011 = vpop.f32.mrf.mxu0
    %v2012 = vadd.f32 %v1860, %v2011
    %v2013 = vpop.f32.mrf.mxu0
    %2014 = vmatprep.mubr.bf16.mxu0 %v922
    %2015 = vmatmul.mubr.bf16.gmra.mxu0 %v921
    %v2016 = vpop.f32.mrf.mxu0
    %v2017 = vadd.f32 %v1860, %v2016
    %v2018 = vpop.f32.mrf.mxu0
    %v2019 = vpop.f32.mrf.mxu0
    %v2020 = vadd.f32 %v1860, %v2019
    %v2021 = vpop.f32.mrf.mxu0
    %2022 = vmatprep.mubr.bf16.mxu0 %v925
    %2023 = vmatmul.mubr.bf16.gmra.mxu0 %v924
    %v2024 = vpop.f32.mrf.mxu0
    %v2025 = vadd.f32 %v1860, %v2024
    %v2026 = vpop.f32.mrf.mxu0
    %v2027 = vpop.f32.mrf.mxu0
    %v2028 = vadd.f32 %v1860, %v2027
    %v2029 = vpop.f32.mrf.mxu0
    %2030 = vmatprep.mubr.bf16.mxu0 %v928
    %2031 = vmatmul.mubr.bf16.gmra.mxu0 %v927
    %v2032 = vpop.f32.mrf.mxu0
    %v2033 = vadd.f32 %v1860, %v2032
    %v2034 = vpop.f32.mrf.mxu0
    %v2035 = vpop.f32.mrf.mxu0
    %v2036 = vadd.f32 %v1860, %v2035
    %v2037 = vpop.f32.mrf.mxu0
    %2038 = vmatprep.mubr.bf16.mxu0 %v931
    %2039 = vmatmul.mubr.bf16.gmra.mxu0 %v930
    %v2040 = vpop.f32.mrf.mxu0
    %v2041 = vadd.f32 %v1860, %v2040
    %v2042 = vpop.f32.mrf.mxu0
    %v2043 = vpop.f32.mrf.mxu0
    %v2044 = vadd.f32 %v1860, %v2043
    %v2045 = vpop.f32.mrf.mxu0
    %2046 = vmatprep.mubr.bf16.mxu0 %v934
    %2047 = vmatmul.mubr.bf16.gmra.mxu0 %v933
    %v2048 = vpop.f32.mrf.mxu0
    %v2049 = vadd.f32 %v1860, %v2048
    %v2050 = vpop.f32.mrf.mxu0
    %v2051 = vpop.f32.mrf.mxu0
    %v2052 = vadd.f32 %v1860, %v2051
    %v2053 = vpop.f32.mrf.mxu0
    %2054 = vmatprep.mubr.bf16.mxu0 %v937
    %2055 = vmatmul.mubr.bf16.gmra.mxu0 %v936
    %v2056 = vpop.f32.mrf.mxu0
    %v2057 = vadd.f32 %v1860, %v2056
    %v2058 = vpop.f32.mrf.mxu0
    %v2059 = vpop.f32.mrf.mxu0
    %v2060 = vadd.f32 %v1860, %v2059
    %v2061 = vpop.f32.mrf.mxu0
    %2062 = vmatprep.mubr.bf16.mxu0 %v940
    %2063 = vmatmul.mubr.bf16.gmra.mxu0 %v939
    %v2064 = vpop.f32.mrf.mxu0
    %v2065 = vadd.f32 %v1860, %v2064
    %v2066 = vpop.f32.mrf.mxu0
    %v2067 = vpop.f32.mrf.mxu0
    %v2068 = vadd.f32 %v1860, %v2067
    %v2069 = vpop.f32.mrf.mxu0
    %2070 = vmatprep.mubr.bf16.mxu0 %v943
    %2071 = vmatmul.mubr.bf16.gmra.mxu0 %v942
    %v2072 = vpop.f32.mrf.mxu0
    %v2073 = vadd.f32 %v1860, %v2072
    %v2074 = vpop.f32.mrf.mxu0
    %v2075 = vpop.f32.mrf.mxu0
    %v2076 = vadd.f32 %v1860, %v2075
    %v2077 = vpop.f32.mrf.mxu0
    %2078 = vmatprep.mubr.bf16.mxu0 %v946
    %2079 = vmatmul.mubr.bf16.gmra.mxu0 %v945
    %v2080 = vpop.f32.mrf.mxu0
    %v2081 = vadd.f32 %v1860, %v2080
    %v2082 = vpop.f32.mrf.mxu0
    %v2083 = vpop.f32.mrf.mxu0
    %v2084 = vadd.f32 %v1860, %v2083
    %v2085 = vpop.f32.mrf.mxu0
    %2086 = vdwg.mxu0
    %2087 = vmatprep.subr.bf16.mxu0 0
    %2088 = vmatpush1.bf16.msra.mxu0 %v1854
    %2089 = vmatprep.subr.bf16.mxu0 0
    %2090 = vmatpush1.bf16.msra.mxu0 %v1853
    %2091 = vmatprep.subr.bf16.mxu0 0
    %2092 = vmatpush1.bf16.msra.mxu0 %v1852
    %2093 = vmatprep.subr.bf16.mxu0 0
    %2094 = vmatpush1.bf16.msra.mxu0 %v1851
    %2095 = vmatprep.subr.bf16.mxu0 0
    %2096 = vmatpush1.bf16.msra.mxu0 %v1850
    %2097 = vmatprep.subr.bf16.mxu0 0
    %2098 = vmatpush1.bf16.msra.mxu0 %v1849
    %2099 = vmatprep.subr.bf16.mxu0 0
    %2100 = vmatpush1.bf16.msra.mxu0 %v1848
    %2101 = vmatprep.subr.bf16.mxu0 0
    %2102 = vmatpush1.bf16.msra.mxu0 %v1847
    %2103 = vmatprep.subr.bf16.mxu0 0
    %2104 = vmatpush2.bf16.msra.mxu0 0
    %2105 = vmatprep.subr.bf16.mxu0 0
    %2106 = vmatpush2.bf16.msra.mxu0 0
    %2107 = vmatprep.subr.bf16.mxu0 0
    %2108 = vmatpush2.bf16.msra.mxu0 0
    %2109 = vmatprep.subr.bf16.mxu0 0
    %2110 = vmatpush2.bf16.msra.mxu0 0
    %2111 = vmatprep.subr.bf16.mxu0 0
    %2112 = vmatpush2.bf16.msra.mxu0 0
    %2113 = vmatprep.subr.bf16.mxu0 0
    %2114 = vmatpush2.bf16.msra.mxu0 0
    %2115 = vmatprep.subr.bf16.mxu0 0
    %2116 = vmatpush2.bf16.msra.mxu0 0
    %2117 = vmatprep.subr.bf16.mxu0 0
    %2118 = vmatpush2.bf16.msra.mxu0 0
    %2119 = vmatprep.mubr.bf16.mxu0 0
    %2120 = vmatmul.mubr.bf16.gmra.mxu0 %v878
    %v2121 = vpop.f32.mrf.mxu0
    %v2122 = vadd.f32 %v1897, %v2121
    %v2123 = vpop.f32.mrf.mxu0
    %v2124 = vpop.f32.mrf.mxu0
    %v2125 = vadd.f32 %v1900, %v2124
    %v2126 = vpop.f32.mrf.mxu0
    %2127 = vmatprep.mubr.bf16.mxu0 0
    %2128 = vmatmul.mubr.bf16.gmra.mxu0 %v881
    %v2129 = vpop.f32.mrf.mxu0
    %v2130 = vadd.f32 %v1905, %v2129
    %v2131 = vpop.f32.mrf.mxu0
    %v2132 = vpop.f32.mrf.mxu0
    %v2133 = vadd.f32 %v1908, %v2132
    %v2134 = vpop.f32.mrf.mxu0
    %2135 = vmatprep.mubr.bf16.mxu0 0
    %2136 = vmatmul.mubr.bf16.gmra.mxu0 %v884
    %v2137 = vpop.f32.mrf.mxu0
    %v2138 = vadd.f32 %v1913, %v2137
    %v2139 = vpop.f32.mrf.mxu0
    %v2140 = vpop.f32.mrf.mxu0
    %v2141 = vadd.f32 %v1916, %v2140
    %v2142 = vpop.f32.mrf.mxu0
    %2143 = vmatprep.mubr.bf16.mxu0 0
    %2144 = vmatmul.mubr.bf16.gmra.mxu0 %v887
    %v2145 = vpop.f32.mrf.mxu0
    %v2146 = vadd.f32 %v1921, %v2145
    %v2147 = vpop.f32.mrf.mxu0
    %v2148 = vpop.f32.mrf.mxu0
    %v2149 = vadd.f32 %v1924, %v2148
    %v2150 = vpop.f32.mrf.mxu0
    %2151 = vmatprep.mubr.bf16.mxu0 0
    %2152 = vmatmul.mubr.bf16.gmra.mxu0 %v890
    %v2153 = vpop.f32.mrf.mxu0
    %v2154 = vadd.f32 %v1929, %v2153
    %v2155 = vpop.f32.mrf.mxu0
    %v2156 = vpop.f32.mrf.mxu0
    %v2157 = vadd.f32 %v1932, %v2156
    %v2158 = vpop.f32.mrf.mxu0
    %2159 = vmatprep.mubr.bf16.mxu0 0
    %2160 = vmatmul.mubr.bf16.gmra.mxu0 %v893
    %v2161 = vpop.f32.mrf.mxu0
    %v2162 = vadd.f32 %v1937, %v2161
    %v2163 = vpop.f32.mrf.mxu0
    %v2164 = vpop.f32.mrf.mxu0
    %v2165 = vadd.f32 %v1940, %v2164
    %v2166 = vpop.f32.mrf.mxu0
    %2167 = vmatprep.mubr.bf16.mxu0 0
    %2168 = vmatmul.mubr.bf16.gmra.mxu0 %v896
    %v2169 = vpop.f32.mrf.mxu0
    %v2170 = vadd.f32 %v1945, %v2169
    %v2171 = vpop.f32.mrf.mxu0
    %v2172 = vpop.f32.mrf.mxu0
    %v2173 = vadd.f32 %v1948, %v2172
    %v2174 = vpop.f32.mrf.mxu0
    %2175 = vmatprep.mubr.bf16.mxu0 0
    %2176 = vmatmul.mubr.bf16.gmra.mxu0 %v899
    %v2177 = vpop.f32.mrf.mxu0
    %v2178 = vadd.f32 %v1953, %v2177
    %v2179 = vpop.f32.mrf.mxu0
    %v2180 = vpop.f32.mrf.mxu0
    %v2181 = vadd.f32 %v1956, %v2180
    %v2182 = vpop.f32.mrf.mxu0
    %2183 = vmatprep.mubr.bf16.mxu0 0
    %2184 = vmatmul.mubr.bf16.gmra.mxu0 %v902
    %v2185 = vpop.f32.mrf.mxu0
    %v2186 = vadd.f32 %v1961, %v2185
    %v2187 = vpop.f32.mrf.mxu0
    %v2188 = vpop.f32.mrf.mxu0
    %v2189 = vadd.f32 %v1964, %v2188
    %v2190 = vpop.f32.mrf.mxu0
    %2191 = vmatprep.mubr.bf16.mxu0 0
    %2192 = vmatmul.mubr.bf16.gmra.mxu0 %v905
    %v2193 = vpop.f32.mrf.mxu0
    %v2194 = vadd.f32 %v1969, %v2193
    %v2195 = vpop.f32.mrf.mxu0
    %v2196 = vpop.f32.mrf.mxu0
    %v2197 = vadd.f32 %v1972, %v2196
    %v2198 = vpop.f32.mrf.mxu0
    %2199 = vmatprep.mubr.bf16.mxu0 0
    %2200 = vmatmul.mubr.bf16.gmra.mxu0 %v908
    %v2201 = vpop.f32.mrf.mxu0
    %v2202 = vadd.f32 %v1977, %v2201
    %v2203 = vpop.f32.mrf.mxu0
    %v2204 = vpop.f32.mrf.mxu0
    %v2205 = vadd.f32 %v1980, %v2204
    %v2206 = vpop.f32.mrf.mxu0
    %2207 = vmatprep.mubr.bf16.mxu0 0
    %2208 = vmatmul.mubr.bf16.gmra.mxu0 %v911
    %v2209 = vpop.f32.mrf.mxu0
    %v2210 = vadd.f32 %v1985, %v2209
    %v2211 = vpop.f32.mrf.mxu0
    %v2212 = vpop.f32.mrf.mxu0
    %v2213 = vadd.f32 %v1988, %v2212
    %v2214 = vpop.f32.mrf.mxu0
    %2215 = vmatprep.mubr.bf16.mxu0 0
    %2216 = vmatmul.mubr.bf16.gmra.mxu0 %v914
    %v2217 = vpop.f32.mrf.mxu0
    %v2218 = vadd.f32 %v1993, %v2217
    %v2219 = vpop.f32.mrf.mxu0
    %v2220 = vpop.f32.mrf.mxu0
    %v2221 = vadd.f32 %v1996, %v2220
    %v2222 = vpop.f32.mrf.mxu0
    %2223 = vmatprep.mubr.bf16.mxu0 0
    %2224 = vmatmul.mubr.bf16.gmra.mxu0 %v917
    %v2225 = vpop.f32.mrf.mxu0
    %v2226 = vadd.f32 %v2001, %v2225
    %v2227 = vpop.f32.mrf.mxu0
    %v2228 = vpop.f32.mrf.mxu0
    %v2229 = vadd.f32 %v2004, %v2228
    %v2230 = vpop.f32.mrf.mxu0
    %2231 = vmatprep.mubr.bf16.mxu0 0
    %2232 = vmatmul.mubr.bf16.gmra.mxu0 %v920
    %v2233 = vpop.f32.mrf.mxu0
    %v2234 = vadd.f32 %v2009, %v2233
    %v2235 = vpop.f32.mrf.mxu0
    %v2236 = vpop.f32.mrf.mxu0
    %v2237 = vadd.f32 %v2012, %v2236
    %v2238 = vpop.f32.mrf.mxu0
    %2239 = vmatprep.mubr.bf16.mxu0 0
    %2240 = vmatmul.mubr.bf16.gmra.mxu0 %v923
    %v2241 = vpop.f32.mrf.mxu0
    %v2242 = vadd.f32 %v2017, %v2241
    %v2243 = vpop.f32.mrf.mxu0
    %v2244 = vpop.f32.mrf.mxu0
    %v2245 = vadd.f32 %v2020, %v2244
    %v2246 = vpop.f32.mrf.mxu0
    %2247 = vmatprep.mubr.bf16.mxu0 0
    %2248 = vmatmul.mubr.bf16.gmra.mxu0 %v926
    %v2249 = vpop.f32.mrf.mxu0
    %v2250 = vadd.f32 %v2025, %v2249
    %v2251 = vpop.f32.mrf.mxu0
    %v2252 = vpop.f32.mrf.mxu0
    %v2253 = vadd.f32 %v2028, %v2252
    %v2254 = vpop.f32.mrf.mxu0
    %2255 = vmatprep.mubr.bf16.mxu0 0
    %2256 = vmatmul.mubr.bf16.gmra.mxu0 %v929
    %v2257 = vpop.f32.mrf.mxu0
    %v2258 = vadd.f32 %v2033, %v2257
    %v2259 = vpop.f32.mrf.mxu0
    %v2260 = vpop.f32.mrf.mxu0
    %v2261 = vadd.f32 %v2036, %v2260
    %v2262 = vpop.f32.mrf.mxu0
    %2263 = vmatprep.mubr.bf16.mxu0 0
    %2264 = vmatmul.mubr.bf16.gmra.mxu0 %v932
    %v2265 = vpop.f32.mrf.mxu0
    %v2266 = vadd.f32 %v2041, %v2265
    %v2267 = vpop.f32.mrf.mxu0
    %v2268 = vpop.f32.mrf.mxu0
    %v2269 = vadd.f32 %v2044, %v2268
    %v2270 = vpop.f32.mrf.mxu0
    %2271 = vmatprep.mubr.bf16.mxu0 0
    %2272 = vmatmul.mubr.bf16.gmra.mxu0 %v935
    %v2273 = vpop.f32.mrf.mxu0
    %v2274 = vadd.f32 %v2049, %v2273
    %v2275 = vpop.f32.mrf.mxu0
    %v2276 = vpop.f32.mrf.mxu0
    %v2277 = vadd.f32 %v2052, %v2276
    %v2278 = vpop.f32.mrf.mxu0
    %2279 = vmatprep.mubr.bf16.mxu0 0
    %2280 = vmatmul.mubr.bf16.gmra.mxu0 %v938
    %v2281 = vpop.f32.mrf.mxu0
    %v2282 = vadd.f32 %v2057, %v2281
    %v2283 = vpop.f32.mrf.mxu0
    %v2284 = vpop.f32.mrf.mxu0
    %v2285 = vadd.f32 %v2060, %v2284
    %v2286 = vpop.f32.mrf.mxu0
    %2287 = vmatprep.mubr.bf16.mxu0 0
    %2288 = vmatmul.mubr.bf16.gmra.mxu0 %v941
    %v2289 = vpop.f32.mrf.mxu0
    %v2290 = vadd.f32 %v2065, %v2289
    %v2291 = vpop.f32.mrf.mxu0
    %v2292 = vpop.f32.mrf.mxu0
    %v2293 = vadd.f32 %v2068, %v2292
    %v2294 = vpop.f32.mrf.mxu0
    %2295 = vmatprep.mubr.bf16.mxu0 0
    %2296 = vmatmul.mubr.bf16.gmra.mxu0 %v944
    %v2297 = vpop.f32.mrf.mxu0
    %v2298 = vadd.f32 %v2073, %v2297
    %v2299 = vpop.f32.mrf.mxu0
    %v2300 = vpop.f32.mrf.mxu0
    %v2301 = vadd.f32 %v2076, %v2300
    %v2302 = vpop.f32.mrf.mxu0
    %2303 = vmatprep.mubr.bf16.mxu0 0
    %2304 = vmatmul.mubr.bf16.gmra.mxu0 %v947
    %v2305 = vpop.f32.mrf.mxu0
    %v2306 = vadd.f32 %v2081, %v2305
    %v2307 = vpop.f32.mrf.mxu0
    %v2308 = vpop.f32.mrf.mxu0
    %v2309 = vadd.f32 %v2084, %v2308
    %v2310 = vpop.f32.mrf.mxu0
    %2311 = vdwg.mxu0
    %v2312 = vlaneseq
    %v2313 = vand.u32 %v2312, 127
    %vm2314 = vcmp.lt.s32.totalorder %v2313, 4
    %v2315 = vsel %vm2314, %v2122, -inf
    %v2316 = vsel %vm2314, %v2125, -inf
    %v2317 = vsel %vm2314, %v2130, -inf
    %v2318 = vsel %vm2314, %v2133, -inf
    %v2319 = vsel %vm2314, %v2138, -inf
    %v2320 = vsel %vm2314, %v2141, -inf
    %v2321 = vsel %vm2314, %v2146, -inf
    %v2322 = vsel %vm2314, %v2149, -inf
    %v2323 = vsel %vm2314, %v2154, -inf
    %v2324 = vsel %vm2314, %v2157, -inf
    %v2325 = vsel %vm2314, %v2162, -inf
    %v2326 = vsel %vm2314, %v2165, -inf
    %v2327 = vsel %vm2314, %v2170, -inf
    %v2328 = vsel %vm2314, %v2173, -inf
    %v2329 = vsel %vm2314, %v2178, -inf
    %v2330 = vsel %vm2314, %v2181, -inf
    %v2331 = vsel %vm2314, %v2186, -inf
    %v2332 = vsel %vm2314, %v2189, -inf
    %v2333 = vsel %vm2314, %v2194, -inf
    %v2334 = vsel %vm2314, %v2197, -inf
    %v2335 = vsel %vm2314, %v2202, -inf
    %v2336 = vsel %vm2314, %v2205, -inf
    %v2337 = vsel %vm2314, %v2210, -inf
    %v2338 = vsel %vm2314, %v2213, -inf
    %v2339 = vsel %vm2314, %v2218, -inf
    %v2340 = vsel %vm2314, %v2221, -inf
    %v2341 = vsel %vm2314, %v2226, -inf
    %v2342 = vsel %vm2314, %v2229, -inf
    %v2343 = vsel %vm2314, %v2234, -inf
    %v2344 = vsel %vm2314, %v2237, -inf
    %v2345 = vsel %vm2314, %v2242, -inf
    %v2346 = vsel %vm2314, %v2245, -inf
    %v2347 = vsel %vm2314, %v2250, -inf
    %v2348 = vsel %vm2314, %v2253, -inf
    %v2349 = vsel %vm2314, %v2258, -inf
    %v2350 = vsel %vm2314, %v2261, -inf
    %v2351 = vsel %vm2314, %v2266, -inf
    %v2352 = vsel %vm2314, %v2269, -inf
    %v2353 = vsel %vm2314, %v2274, -inf
    %v2354 = vsel %vm2314, %v2277, -inf
    %v2355 = vsel %vm2314, %v2282, -inf
    %v2356 = vsel %vm2314, %v2285, -inf
    %v2357 = vsel %vm2314, %v2290, -inf
    %v2358 = vsel %vm2314, %v2293, -inf
    %v2359 = vsel %vm2314, %v2298, -inf
    %v2360 = vsel %vm2314, %v2301, -inf
    %v2361 = vsel %vm2314, %v2306, -inf
    %v2362 = vsel %vm2314, %v2309, -inf
    %2363 = vmax.xlane.f32.xlu0 %v2315
    %v2364 = vpop.xlane.xlu0 %2363
    %2365 = vmax.xlane.f32.xlu0 %v2316
    %v2366 = vpop.xlane.xlu0 %2365
    %2367 = vmax.xlane.f32.xlu0 %v2317
    %v2368 = vpop.xlane.xlu0 %2367
    %2369 = vmax.xlane.f32.xlu0 %v2318
    %v2370 = vpop.xlane.xlu0 %2369
    %2371 = vmax.xlane.f32.xlu0 %v2319
    %v2372 = vpop.xlane.xlu0 %2371
    %2373 = vmax.xlane.f32.xlu0 %v2320
    %v2374 = vpop.xlane.xlu0 %2373
    %2375 = vmax.xlane.f32.xlu0 %v2321
    %v2376 = vpop.xlane.xlu0 %2375
    %2377 = vmax.xlane.f32.xlu0 %v2322
    %v2378 = vpop.xlane.xlu0 %2377
    %2379 = vmax.xlane.f32.xlu0 %v2323
    %v2380 = vpop.xlane.xlu0 %2379
    %2381 = vmax.xlane.f32.xlu0 %v2324
    %v2382 = vpop.xlane.xlu0 %2381
    %2383 = vmax.xlane.f32.xlu0 %v2325
    %v2384 = vpop.xlane.xlu0 %2383
    %2385 = vmax.xlane.f32.xlu0 %v2326
    %v2386 = vpop.xlane.xlu0 %2385
    %2387 = vmax.xlane.f32.xlu0 %v2327
    %v2388 = vpop.xlane.xlu0 %2387
    %2389 = vmax.xlane.f32.xlu0 %v2328
    %v2390 = vpop.xlane.xlu0 %2389
    %2391 = vmax.xlane.f32.xlu0 %v2329
    %v2392 = vpop.xlane.xlu0 %2391
    %2393 = vmax.xlane.f32.xlu0 %v2330
    %v2394 = vpop.xlane.xlu0 %2393
    %2395 = vmax.xlane.f32.xlu0 %v2331
    %v2396 = vpop.xlane.xlu0 %2395
    %2397 = vmax.xlane.f32.xlu0 %v2332
    %v2398 = vpop.xlane.xlu0 %2397
    %2399 = vmax.xlane.f32.xlu0 %v2333
    %v2400 = vpop.xlane.xlu0 %2399
    %2401 = vmax.xlane.f32.xlu0 %v2334
    %v2402 = vpop.xlane.xlu0 %2401
    %2403 = vmax.xlane.f32.xlu0 %v2335
    %v2404 = vpop.xlane.xlu0 %2403
    %2405 = vmax.xlane.f32.xlu0 %v2336
    %v2406 = vpop.xlane.xlu0 %2405
    %2407 = vmax.xlane.f32.xlu0 %v2337
    %v2408 = vpop.xlane.xlu0 %2407
    %2409 = vmax.xlane.f32.xlu0 %v2338
    %v2410 = vpop.xlane.xlu0 %2409
    %2411 = vmax.xlane.f32.xlu0 %v2339
    %v2412 = vpop.xlane.xlu0 %2411
    %2413 = vmax.xlane.f32.xlu0 %v2340
    %v2414 = vpop.xlane.xlu0 %2413
    %2415 = vmax.xlane.f32.xlu0 %v2341
    %v2416 = vpop.xlane.xlu0 %2415
    %2417 = vmax.xlane.f32.xlu0 %v2342
    %v2418 = vpop.xlane.xlu0 %2417
    %2419 = vmax.xlane.f32.xlu0 %v2343
    %v2420 = vpop.xlane.xlu0 %2419
    %2421 = vmax.xlane.f32.xlu0 %v2344
    %v2422 = vpop.xlane.xlu0 %2421
    %2423 = vmax.xlane.f32.xlu0 %v2345
    %v2424 = vpop.xlane.xlu0 %2423
    %2425 = vmax.xlane.f32.xlu0 %v2346
    %v2426 = vpop.xlane.xlu0 %2425
    %2427 = vmax.xlane.f32.xlu0 %v2347
    %v2428 = vpop.xlane.xlu0 %2427
    %2429 = vmax.xlane.f32.xlu0 %v2348
    %v2430 = vpop.xlane.xlu0 %2429
    %2431 = vmax.xlane.f32.xlu0 %v2349
    %v2432 = vpop.xlane.xlu0 %2431
    %2433 = vmax.xlane.f32.xlu0 %v2350
    %v2434 = vpop.xlane.xlu0 %2433
    %2435 = vmax.xlane.f32.xlu0 %v2351
    %v2436 = vpop.xlane.xlu0 %2435
    %2437 = vmax.xlane.f32.xlu0 %v2352
    %v2438 = vpop.xlane.xlu0 %2437
    %2439 = vmax.xlane.f32.xlu0 %v2353
    %v2440 = vpop.xlane.xlu0 %2439
    %2441 = vmax.xlane.f32.xlu0 %v2354
    %v2442 = vpop.xlane.xlu0 %2441
    %2443 = vmax.xlane.f32.xlu0 %v2355
    %v2444 = vpop.xlane.xlu0 %2443
    %2445 = vmax.xlane.f32.xlu0 %v2356
    %v2446 = vpop.xlane.xlu0 %2445
    %2447 = vmax.xlane.f32.xlu0 %v2357
    %v2448 = vpop.xlane.xlu0 %2447
    %2449 = vmax.xlane.f32.xlu0 %v2358
    %v2450 = vpop.xlane.xlu0 %2449
    %2451 = vmax.xlane.f32.xlu0 %v2359
    %v2452 = vpop.xlane.xlu0 %2451
    %2453 = vmax.xlane.f32.xlu0 %v2360
    %v2454 = vpop.xlane.xlu0 %2453
    %2455 = vmax.xlane.f32.xlu0 %v2361
    %v2456 = vpop.xlane.xlu0 %2455
    %2457 = vmax.xlane.f32.xlu0 %v2362
    %v2458 = vpop.xlane.xlu0 %2457
    %v2459 = vsub.f32 %v2315, %v2364
    %v2460 = vsub.f32 %v2316, %v2366
    %v2461 = vsub.f32 %v2317, %v2368
    %v2462 = vsub.f32 %v2318, %v2370
    %v2463 = vsub.f32 %v2319, %v2372
    %v2464 = vsub.f32 %v2320, %v2374
    %v2465 = vsub.f32 %v2321, %v2376
    %v2466 = vsub.f32 %v2322, %v2378
    %v2467 = vsub.f32 %v2323, %v2380
    %v2468 = vsub.f32 %v2324, %v2382
    %v2469 = vsub.f32 %v2325, %v2384
    %v2470 = vsub.f32 %v2326, %v2386
    %v2471 = vsub.f32 %v2327, %v2388
    %v2472 = vsub.f32 %v2328, %v2390
    %v2473 = vsub.f32 %v2329, %v2392
    %v2474 = vsub.f32 %v2330, %v2394
    %v2475 = vsub.f32 %v2331, %v2396
    %v2476 = vsub.f32 %v2332, %v2398
    %v2477 = vsub.f32 %v2333, %v2400
    %v2478 = vsub.f32 %v2334, %v2402
    %v2479 = vsub.f32 %v2335, %v2404
    %v2480 = vsub.f32 %v2336, %v2406
    %v2481 = vsub.f32 %v2337, %v2408
    %v2482 = vsub.f32 %v2338, %v2410
    %v2483 = vsub.f32 %v2339, %v2412
    %v2484 = vsub.f32 %v2340, %v2414
    %v2485 = vsub.f32 %v2341, %v2416
    %v2486 = vsub.f32 %v2342, %v2418
    %v2487 = vsub.f32 %v2343, %v2420
    %v2488 = vsub.f32 %v2344, %v2422
    %v2489 = vsub.f32 %v2345, %v2424
    %v2490 = vsub.f32 %v2346, %v2426
    %v2491 = vsub.f32 %v2347, %v2428
    %v2492 = vsub.f32 %v2348, %v2430
    %v2493 = vsub.f32 %v2349, %v2432
    %v2494 = vsub.f32 %v2350, %v2434
    %v2495 = vsub.f32 %v2351, %v2436
    %v2496 = vsub.f32 %v2352, %v2438
    %v2497 = vsub.f32 %v2353, %v2440
    %v2498 = vsub.f32 %v2354, %v2442
    %v2499 = vsub.f32 %v2355, %v2444
    %v2500 = vsub.f32 %v2356, %v2446
    %v2501 = vsub.f32 %v2357, %v2448
    %v2502 = vsub.f32 %v2358, %v2450
    %v2503 = vsub.f32 %v2359, %v2452
    %v2504 = vsub.f32 %v2360, %v2454
    %v2505 = vsub.f32 %v2361, %v2456
    %v2506 = vsub.f32 %v2362, %v2458
    %v2507 = vmul.f32 %v2459, 1.442695
    %v2508 = vpow.pop %v2507
    %v2509 = vmul.f32 %v2460, 1.442695
    %v2510 = vpow.pop %v2509
    %v2511 = vmul.f32 %v2461, 1.442695
    %v2512 = vpow.pop %v2511
    %v2513 = vmul.f32 %v2462, 1.442695
    %v2514 = vpow.pop %v2513
    %v2515 = vmul.f32 %v2463, 1.442695
    %v2516 = vpow.pop %v2515
    %v2517 = vmul.f32 %v2464, 1.442695
    %v2518 = vpow.pop %v2517
    %v2519 = vmul.f32 %v2465, 1.442695
    %v2520 = vpow.pop %v2519
    %v2521 = vmul.f32 %v2466, 1.442695
    %v2522 = vpow.pop %v2521
    %v2523 = vmul.f32 %v2467, 1.442695
    %v2524 = vpow.pop %v2523
    %v2525 = vmul.f32 %v2468, 1.442695
    %v2526 = vpow.pop %v2525
    %v2527 = vmul.f32 %v2469, 1.442695
    %v2528 = vpow.pop %v2527
    %v2529 = vmul.f32 %v2470, 1.442695
    %v2530 = vpow.pop %v2529
    %v2531 = vmul.f32 %v2471, 1.442695
    %v2532 = vpow.pop %v2531
    %v2533 = vmul.f32 %v2472, 1.442695
    %v2534 = vpow.pop %v2533
    %v2535 = vmul.f32 %v2473, 1.442695
    %v2536 = vpow.pop %v2535
    %v2537 = vmul.f32 %v2474, 1.442695
    %v2538 = vpow.pop %v2537
    %v2539 = vmul.f32 %v2475, 1.442695
    %v2540 = vpow.pop %v2539
    %v2541 = vmul.f32 %v2476, 1.442695
    %v2542 = vpow.pop %v2541
    %v2543 = vmul.f32 %v2477, 1.442695
    %v2544 = vpow.pop %v2543
    %v2545 = vmul.f32 %v2478, 1.442695
    %v2546 = vpow.pop %v2545
    %v2547 = vmul.f32 %v2479, 1.442695
    %v2548 = vpow.pop %v2547
    %v2549 = vmul.f32 %v2480, 1.442695
    %v2550 = vpow.pop %v2549
    %v2551 = vmul.f32 %v2481, 1.442695
    %v2552 = vpow.pop %v2551
    %v2553 = vmul.f32 %v2482, 1.442695
    %v2554 = vpow.pop %v2553
    %v2555 = vmul.f32 %v2483, 1.442695
    %v2556 = vpow.pop %v2555
    %v2557 = vmul.f32 %v2484, 1.442695
    %v2558 = vpow.pop %v2557
    %v2559 = vmul.f32 %v2485, 1.442695
    %v2560 = vpow.pop %v2559
    %v2561 = vmul.f32 %v2486, 1.442695
    %v2562 = vpow.pop %v2561
    %v2563 = vmul.f32 %v2487, 1.442695
    %v2564 = vpow.pop %v2563
    %v2565 = vmul.f32 %v2488, 1.442695
    %v2566 = vpow.pop %v2565
    %v2567 = vmul.f32 %v2489, 1.442695
    %v2568 = vpow.pop %v2567
    %v2569 = vmul.f32 %v2490, 1.442695
    %v2570 = vpow.pop %v2569
    %v2571 = vmul.f32 %v2491, 1.442695
    %v2572 = vpow.pop %v2571
    %v2573 = vmul.f32 %v2492, 1.442695
    %v2574 = vpow.pop %v2573
    %v2575 = vmul.f32 %v2493, 1.442695
    %v2576 = vpow.pop %v2575
    %v2577 = vmul.f32 %v2494, 1.442695
    %v2578 = vpow.pop %v2577
    %v2579 = vmul.f32 %v2495, 1.442695
    %v2580 = vpow.pop %v2579
    %v2581 = vmul.f32 %v2496, 1.442695
    %v2582 = vpow.pop %v2581
    %v2583 = vmul.f32 %v2497, 1.442695
    %v2584 = vpow.pop %v2583
    %v2585 = vmul.f32 %v2498, 1.442695
    %v2586 = vpow.pop %v2585
    %v2587 = vmul.f32 %v2499, 1.442695
    %v2588 = vpow.pop %v2587
    %v2589 = vmul.f32 %v2500, 1.442695
    %v2590 = vpow.pop %v2589
    %v2591 = vmul.f32 %v2501, 1.442695
    %v2592 = vpow.pop %v2591
    %v2593 = vmul.f32 %v2502, 1.442695
    %v2594 = vpow.pop %v2593
    %v2595 = vmul.f32 %v2503, 1.442695
    %v2596 = vpow.pop %v2595
    %v2597 = vmul.f32 %v2504, 1.442695
    %v2598 = vpow.pop %v2597
    %v2599 = vmul.f32 %v2505, 1.442695
    %v2600 = vpow.pop %v2599
    %v2601 = vmul.f32 %v2506, 1.442695
    %v2602 = vpow.pop %v2601
    %2603 = vadd.xlane.f32.xlu0 %v2508
    %v2604 = vpop.xlane.xlu0 %2603
    %2605 = vadd.xlane.f32.xlu0 %v2510
    %v2606 = vpop.xlane.xlu0 %2605
    %2607 = vadd.xlane.f32.xlu0 %v2512
    %v2608 = vpop.xlane.xlu0 %2607
    %2609 = vadd.xlane.f32.xlu0 %v2514
    %v2610 = vpop.xlane.xlu0 %2609
    %2611 = vadd.xlane.f32.xlu0 %v2516
    %v2612 = vpop.xlane.xlu0 %2611
    %2613 = vadd.xlane.f32.xlu0 %v2518
    %v2614 = vpop.xlane.xlu0 %2613
    %2615 = vadd.xlane.f32.xlu0 %v2520
    %v2616 = vpop.xlane.xlu0 %2615
    %2617 = vadd.xlane.f32.xlu0 %v2522
    %v2618 = vpop.xlane.xlu0 %2617
    %2619 = vadd.xlane.f32.xlu0 %v2524
    %v2620 = vpop.xlane.xlu0 %2619
    %2621 = vadd.xlane.f32.xlu0 %v2526
    %v2622 = vpop.xlane.xlu0 %2621
    %2623 = vadd.xlane.f32.xlu0 %v2528
    %v2624 = vpop.xlane.xlu0 %2623
    %2625 = vadd.xlane.f32.xlu0 %v2530
    %v2626 = vpop.xlane.xlu0 %2625
    %2627 = vadd.xlane.f32.xlu0 %v2532
    %v2628 = vpop.xlane.xlu0 %2627
    %2629 = vadd.xlane.f32.xlu0 %v2534
    %v2630 = vpop.xlane.xlu0 %2629
    %2631 = vadd.xlane.f32.xlu0 %v2536
    %v2632 = vpop.xlane.xlu0 %2631
    %2633 = vadd.xlane.f32.xlu0 %v2538
    %v2634 = vpop.xlane.xlu0 %2633
    %2635 = vadd.xlane.f32.xlu0 %v2540
    %v2636 = vpop.xlane.xlu0 %2635
    %2637 = vadd.xlane.f32.xlu0 %v2542
    %v2638 = vpop.xlane.xlu0 %2637
    %2639 = vadd.xlane.f32.xlu0 %v2544
    %v2640 = vpop.xlane.xlu0 %2639
    %2641 = vadd.xlane.f32.xlu0 %v2546
    %v2642 = vpop.xlane.xlu0 %2641
    %2643 = vadd.xlane.f32.xlu0 %v2548
    %v2644 = vpop.xlane.xlu0 %2643
    %2645 = vadd.xlane.f32.xlu0 %v2550
    %v2646 = vpop.xlane.xlu0 %2645
    %2647 = vadd.xlane.f32.xlu0 %v2552
    %v2648 = vpop.xlane.xlu0 %2647
    %2649 = vadd.xlane.f32.xlu0 %v2554
    %v2650 = vpop.xlane.xlu0 %2649
    %2651 = vadd.xlane.f32.xlu0 %v2556
    %v2652 = vpop.xlane.xlu0 %2651
    %2653 = vadd.xlane.f32.xlu0 %v2558
    %v2654 = vpop.xlane.xlu0 %2653
    %2655 = vadd.xlane.f32.xlu0 %v2560
    %v2656 = vpop.xlane.xlu0 %2655
    %2657 = vadd.xlane.f32.xlu0 %v2562
    %v2658 = vpop.xlane.xlu0 %2657
    %2659 = vadd.xlane.f32.xlu0 %v2564
    %v2660 = vpop.xlane.xlu0 %2659
    %2661 = vadd.xlane.f32.xlu0 %v2566
    %v2662 = vpop.xlane.xlu0 %2661
    %2663 = vadd.xlane.f32.xlu0 %v2568
    %v2664 = vpop.xlane.xlu0 %2663
    %2665 = vadd.xlane.f32.xlu0 %v2570
    %v2666 = vpop.xlane.xlu0 %2665
    %2667 = vadd.xlane.f32.xlu0 %v2572
    %v2668 = vpop.xlane.xlu0 %2667
    %2669 = vadd.xlane.f32.xlu0 %v2574
    %v2670 = vpop.xlane.xlu0 %2669
    %2671 = vadd.xlane.f32.xlu0 %v2576
    %v2672 = vpop.xlane.xlu0 %2671
    %2673 = vadd.xlane.f32.xlu0 %v2578
    %v2674 = vpop.xlane.xlu0 %2673
    %2675 = vadd.xlane.f32.xlu0 %v2580
    %v2676 = vpop.xlane.xlu0 %2675
    %2677 = vadd.xlane.f32.xlu0 %v2582
    %v2678 = vpop.xlane.xlu0 %2677
    %2679 = vadd.xlane.f32.xlu0 %v2584
    %v2680 = vpop.xlane.xlu0 %2679
    %2681 = vadd.xlane.f32.xlu0 %v2586
    %v2682 = vpop.xlane.xlu0 %2681
    %2683 = vadd.xlane.f32.xlu0 %v2588
    %v2684 = vpop.xlane.xlu0 %2683
    %2685 = vadd.xlane.f32.xlu0 %v2590
    %v2686 = vpop.xlane.xlu0 %2685
    %2687 = vadd.xlane.f32.xlu0 %v2592
    %v2688 = vpop.xlane.xlu0 %2687
    %2689 = vadd.xlane.f32.xlu0 %v2594
    %v2690 = vpop.xlane.xlu0 %2689
    %2691 = vadd.xlane.f32.xlu0 %v2596
    %v2692 = vpop.xlane.xlu0 %2691
    %2693 = vadd.xlane.f32.xlu0 %v2598
    %v2694 = vpop.xlane.xlu0 %2693
    %2695 = vadd.xlane.f32.xlu0 %v2600
    %v2696 = vpop.xlane.xlu0 %2695
    %2697 = vadd.xlane.f32.xlu0 %v2602
    %v2698 = vpop.xlane.xlu0 %2697
    %v2699 = vlog2.pop %v2604
    %v2700 = vmul.f32 %v2699, 0.6931472
    %v2701 = vlog2.pop %v2606
    %v2702 = vmul.f32 %v2701, 0.6931472
    %v2703 = vlog2.pop %v2608
    %v2704 = vmul.f32 %v2703, 0.6931472
    %v2705 = vlog2.pop %v2610
    %v2706 = vmul.f32 %v2705, 0.6931472
    %v2707 = vlog2.pop %v2612
    %v2708 = vmul.f32 %v2707, 0.6931472
    %v2709 = vlog2.pop %v2614
    %v2710 = vmul.f32 %v2709, 0.6931472
    %v2711 = vlog2.pop %v2616
    %v2712 = vmul.f32 %v2711, 0.6931472
    %v2713 = vlog2.pop %v2618
    %v2714 = vmul.f32 %v2713, 0.6931472
    %v2715 = vlog2.pop %v2620
    %v2716 = vmul.f32 %v2715, 0.6931472
    %v2717 = vlog2.pop %v2622
    %v2718 = vmul.f32 %v2717, 0.6931472
    %v2719 = vlog2.pop %v2624
    %v2720 = vmul.f32 %v2719, 0.6931472
    %v2721 = vlog2.pop %v2626
    %v2722 = vmul.f32 %v2721, 0.6931472
    %v2723 = vlog2.pop %v2628
    %v2724 = vmul.f32 %v2723, 0.6931472
    %v2725 = vlog2.pop %v2630
    %v2726 = vmul.f32 %v2725, 0.6931472
    %v2727 = vlog2.pop %v2632
    %v2728 = vmul.f32 %v2727, 0.6931472
    %v2729 = vlog2.pop %v2634
    %v2730 = vmul.f32 %v2729, 0.6931472
    %v2731 = vlog2.pop %v2636
    %v2732 = vmul.f32 %v2731, 0.6931472
    %v2733 = vlog2.pop %v2638
    %v2734 = vmul.f32 %v2733, 0.6931472
    %v2735 = vlog2.pop %v2640
    %v2736 = vmul.f32 %v2735, 0.6931472
    %v2737 = vlog2.pop %v2642
    %v2738 = vmul.f32 %v2737, 0.6931472
    %v2739 = vlog2.pop %v2644
    %v2740 = vmul.f32 %v2739, 0.6931472
    %v2741 = vlog2.pop %v2646
    %v2742 = vmul.f32 %v2741, 0.6931472
    %v2743 = vlog2.pop %v2648
    %v2744 = vmul.f32 %v2743, 0.6931472
    %v2745 = vlog2.pop %v2650
    %v2746 = vmul.f32 %v2745, 0.6931472
    %v2747 = vlog2.pop %v2652
    %v2748 = vmul.f32 %v2747, 0.6931472
    %v2749 = vlog2.pop %v2654
    %v2750 = vmul.f32 %v2749, 0.6931472
    %v2751 = vlog2.pop %v2656
    %v2752 = vmul.f32 %v2751, 0.6931472
    %v2753 = vlog2.pop %v2658
    %v2754 = vmul.f32 %v2753, 0.6931472
    %v2755 = vlog2.pop %v2660
    %v2756 = vmul.f32 %v2755, 0.6931472
    %v2757 = vlog2.pop %v2662
    %v2758 = vmul.f32 %v2757, 0.6931472
    %v2759 = vlog2.pop %v2664
    %v2760 = vmul.f32 %v2759, 0.6931472
    %v2761 = vlog2.pop %v2666
    %v2762 = vmul.f32 %v2761, 0.6931472
    %v2763 = vlog2.pop %v2668
    %v2764 = vmul.f32 %v2763, 0.6931472
    %v2765 = vlog2.pop %v2670
    %v2766 = vmul.f32 %v2765, 0.6931472
    %v2767 = vlog2.pop %v2672
    %v2768 = vmul.f32 %v2767, 0.6931472
    %v2769 = vlog2.pop %v2674
    %v2770 = vmul.f32 %v2769, 0.6931472
    %v2771 = vlog2.pop %v2676
    %v2772 = vmul.f32 %v2771, 0.6931472
    %v2773 = vlog2.pop %v2678
    %v2774 = vmul.f32 %v2773, 0.6931472
    %v2775 = vlog2.pop %v2680
    %v2776 = vmul.f32 %v2775, 0.6931472
    %v2777 = vlog2.pop %v2682
    %v2778 = vmul.f32 %v2777, 0.6931472
    %v2779 = vlog2.pop %v2684
    %v2780 = vmul.f32 %v2779, 0.6931472
    %v2781 = vlog2.pop %v2686
    %v2782 = vmul.f32 %v2781, 0.6931472
    %v2783 = vlog2.pop %v2688
    %v2784 = vmul.f32 %v2783, 0.6931472
    %v2785 = vlog2.pop %v2690
    %v2786 = vmul.f32 %v2785, 0.6931472
    %v2787 = vlog2.pop %v2692
    %v2788 = vmul.f32 %v2787, 0.6931472
    %v2789 = vlog2.pop %v2694
    %v2790 = vmul.f32 %v2789, 0.6931472
    %v2791 = vlog2.pop %v2696
    %v2792 = vmul.f32 %v2791, 0.6931472
    %v2793 = vlog2.pop %v2698
    %v2794 = vmul.f32 %v2793, 0.6931472
    %v2795 = vsub.f32 %v2459, %v2700
    %v2796 = vsub.f32 %v2460, %v2702
    %v2797 = vsub.f32 %v2461, %v2704
    %v2798 = vsub.f32 %v2462, %v2706
    %v2799 = vsub.f32 %v2463, %v2708
    %v2800 = vsub.f32 %v2464, %v2710
    %v2801 = vsub.f32 %v2465, %v2712
    %v2802 = vsub.f32 %v2466, %v2714
    %v2803 = vsub.f32 %v2467, %v2716
    %v2804 = vsub.f32 %v2468, %v2718
    %v2805 = vsub.f32 %v2469, %v2720
    %v2806 = vsub.f32 %v2470, %v2722
    %v2807 = vsub.f32 %v2471, %v2724
    %v2808 = vsub.f32 %v2472, %v2726
    %v2809 = vsub.f32 %v2473, %v2728
    %v2810 = vsub.f32 %v2474, %v2730
    %v2811 = vsub.f32 %v2475, %v2732
    %v2812 = vsub.f32 %v2476, %v2734
    %v2813 = vsub.f32 %v2477, %v2736
    %v2814 = vsub.f32 %v2478, %v2738
    %v2815 = vsub.f32 %v2479, %v2740
    %v2816 = vsub.f32 %v2480, %v2742
    %v2817 = vsub.f32 %v2481, %v2744
    %v2818 = vsub.f32 %v2482, %v2746
    %v2819 = vsub.f32 %v2483, %v2748
    %v2820 = vsub.f32 %v2484, %v2750
    %v2821 = vsub.f32 %v2485, %v2752
    %v2822 = vsub.f32 %v2486, %v2754
    %v2823 = vsub.f32 %v2487, %v2756
    %v2824 = vsub.f32 %v2488, %v2758
    %v2825 = vsub.f32 %v2489, %v2760
    %v2826 = vsub.f32 %v2490, %v2762
    %v2827 = vsub.f32 %v2491, %v2764
    %v2828 = vsub.f32 %v2492, %v2766
    %v2829 = vsub.f32 %v2493, %v2768
    %v2830 = vsub.f32 %v2494, %v2770
    %v2831 = vsub.f32 %v2495, %v2772
    %v2832 = vsub.f32 %v2496, %v2774
    %v2833 = vsub.f32 %v2497, %v2776
    %v2834 = vsub.f32 %v2498, %v2778
    %v2835 = vsub.f32 %v2499, %v2780
    %v2836 = vsub.f32 %v2500, %v2782
    %v2837 = vsub.f32 %v2501, %v2784
    %v2838 = vsub.f32 %v2502, %v2786
    %v2839 = vsub.f32 %v2503, %v2788
    %v2840 = vsub.f32 %v2504, %v2790
    %v2841 = vsub.f32 %v2505, %v2792
    %v2842 = vsub.f32 %v2506, %v2794
    %2843 = vst [vmem:[%s6] sm:$0xff] %v2795
    %2844 = vst [vmem:[%s6 + $0x8] sm:$0xff] %v2796
    %2845 = vst [vmem:[%s6 + $0x10] sm:$0xff] %v2797
    %2846 = vst [vmem:[%s6 + $0x18] sm:$0xff] %v2798
    %2847 = vst [vmem:[%s6 + $0x20] sm:$0xff] %v2799
    %2848 = vst [vmem:[%s6 + $0x28] sm:$0xff] %v2800
    %2849 = vst [vmem:[%s6 + $0x30] sm:$0xff] %v2801
    %2850 = vst [vmem:[%s6 + $0x38] sm:$0xff] %v2802
    %2851 = vst [vmem:[%s6 + $0x40] sm:$0xff] %v2803
    %2852 = vst [vmem:[%s6 + $0x48] sm:$0xff] %v2804
    %2853 = vst [vmem:[%s6 + $0x50] sm:$0xff] %v2805
    %2854 = vst [vmem:[%s6 + $0x58] sm:$0xff] %v2806
    %2855 = vst [vmem:[%s6 + $0x60] sm:$0xff] %v2807
    %2856 = vst [vmem:[%s6 + $0x68] sm:$0xff] %v2808
    %2857 = vst [vmem:[%s6 + $0x70] sm:$0xff] %v2809
    %2858 = vst [vmem:[%s6 + $0x78] sm:$0xff] %v2810
    %2859 = vst [vmem:[%s6 + $0x80] sm:$0xff] %v2811
    %2860 = vst [vmem:[%s6 + $0x88] sm:$0xff] %v2812
    %2861 = vst [vmem:[%s6 + $0x90] sm:$0xff] %v2813
    %2862 = vst [vmem:[%s6 + $0x98] sm:$0xff] %v2814
    %2863 = vst [vmem:[%s6 + $0xa0] sm:$0xff] %v2815
    %2864 = vst [vmem:[%s6 + $0xa8] sm:$0xff] %v2816
    %2865 = vst [vmem:[%s6 + $0xb0] sm:$0xff] %v2817
    %2866 = vst [vmem:[%s6 + $0xb8] sm:$0xff] %v2818
    %2867 = vst [vmem:[%s6 + $0xc0] sm:$0xff] %v2819
    %2868 = vst [vmem:[%s6 + $0xc8] sm:$0xff] %v2820
    %2869 = vst [vmem:[%s6 + $0xd0] sm:$0xff] %v2821
    %2870 = vst [vmem:[%s6 + $0xd8] sm:$0xff] %v2822
    %2871 = vst [vmem:[%s6 + $0xe0] sm:$0xff] %v2823
    %2872 = vst [vmem:[%s6 + $0xe8] sm:$0xff] %v2824
    %2873 = vst [vmem:[%s6 + $0xf0] sm:$0xff] %v2825
    %2874 = vst [vmem:[%s6 + $0xf8] sm:$0xff] %v2826
    %2875 = vst [vmem:[%s6 + $0x100] sm:$0xff] %v2827
    %2876 = vst [vmem:[%s6 + $0x108] sm:$0xff] %v2828
    %2877 = vst [vmem:[%s6 + $0x110] sm:$0xff] %v2829
    %2878 = vst [vmem:[%s6 + $0x118] sm:$0xff] %v2830
    %2879 = vst [vmem:[%s6 + $0x120] sm:$0xff] %v2831
    %2880 = vst [vmem:[%s6 + $0x128] sm:$0xff] %v2832
    %2881 = vst [vmem:[%s6 + $0x130] sm:$0xff] %v2833
    %2882 = vst [vmem:[%s6 + $0x138] sm:$0xff] %v2834
    %2883 = vst [vmem:[%s6 + $0x140] sm:$0xff] %v2835
    %2884 = vst [vmem:[%s6 + $0x148] sm:$0xff] %v2836
    %2885 = vst [vmem:[%s6 + $0x150] sm:$0xff] %v2837
    %2886 = vst [vmem:[%s6 + $0x158] sm:$0xff] %v2838
    %2887 = vst [vmem:[%s6 + $0x160] sm:$0xff] %v2839
    %2888 = vst [vmem:[%s6 + $0x168] sm:$0xff] %v2840
    %2889 = vst [vmem:[%s6 + $0x170] sm:$0xff] %v2841
    %2890 = vst [vmem:[%s6 + $0x178] sm:$0xff] %v2842
    // Predicated region
    $region30: #{gcn_forward_padded.1} parent=1 // pred_check
      _
    $region31: #{gcn_forward_padded.1} parent=1 // pred_check_branch
      %2892 = sbr.rel (0) target = $region33
    $region32: #{gcn_forward_padded.1} parent=1 // pred_region
      _
    $region33: #{gcn_forward_padded.1} parent=1 // pred_fallthru
      _
    // Predicated region
    $region34: #{gcn_forward_padded.1} parent=1 // pred_check
      _
    $region35: #{gcn_forward_padded.1} parent=1 // pred_check_branch
      %2894 = sbr.rel (0) target = $region37
    $region36: #{gcn_forward_padded.1} parent=1 // pred_region
      _
    $region37: #{gcn_forward_padded.1} parent=1 // pred_fallthru
      _
    %2895 = vsyncpa [#allocation3], 1

</llo_original>
